<compile_context>
chip_gen: v6e
topology: v6e:2x2x1
jax: 0.10.0
libtpu: 0.0.40
codegen_flags: <defaults>
</compile_context>

<pallas_src>
import math
import functools

import jax
import jax.numpy as jnp
from jax.experimental import pallas as pl
from jax.experimental.pallas import tpu as pltpu


_SQRT_HALF = 0.7071067811865476


def _round_up(x, m):
    return ((x + m - 1) // m) * m


def _erf_f32(x):
    # Abramowitz & Stegun 7.1.26 polynomial (max abs error ~1.5e-7). Only uses
    # ops with guaranteed Mosaic lowering (exp / mul / add / abs / where / div).
    a1, a2, a3, a4, a5 = (0.254829592, -0.284496736, 1.421413741,
                          -1.453152027, 1.061405429)
    p = 0.3275911
    ax = jnp.abs(x)
    t = 1.0 / (1.0 + p * ax)
    poly = ((((a5 * t + a4) * t + a3) * t + a2) * t + a1) * t
    y = 1.0 - poly * jnp.exp(-ax * ax)
    return jnp.where(x >= 0.0, y, -y)


def _gelu_exact(x):
    # Exact (erf-based) GELU, matching torch.nn.functional.gelu / ACT2FN["gelu"].
    return 0.5 * x * (1.0 + _erf_f32(x * _SQRT_HALF))


def _mlm_head_kernel(x_ref, wd_ref, bd_ref, g_ref, beta_ref,
                     wdec_ref, bdec_ref, o_ref, t_ref, *, eps):
    """grid = (row_tile, vocab_tile).  t_ref: (TM, H) VMEM scratch, MXU dtype."""
    # --- transform (dense -> exact GELU -> LayerNorm), once per row tile -----
    @pl.when(pl.program_id(1) == 0)
    def _():
        h = jnp.dot(x_ref[...], wd_ref[...],
                    preferred_element_type=jnp.float32)           # (TM, H) f32
        h = h + bd_ref[...].astype(jnp.float32)
        h = _gelu_exact(h)
        mean = jnp.mean(h, axis=-1, keepdims=True)
        c = h - mean
        var = jnp.mean(c * c, axis=-1, keepdims=True)
        hn = c * jax.lax.rsqrt(var + eps)
        # single cast to the matmul input dtype; reused for every vocab tile
        t_ref[...] = (hn * g_ref[...].astype(jnp.float32)
                      + beta_ref[...].astype(jnp.float32)).astype(t_ref.dtype)

    # --- decoder: lane-dense (TM, TV) matmul + bias epilogue ------------------
    logits = jnp.dot(t_ref[...], wdec_ref[...],
                     preferred_element_type=jnp.float32)
    o_ref[...] = (logits + bdec_ref[...].astype(jnp.float32)).astype(o_ref.dtype)


def bert_mlm_head(hidden_states, w_dense, b_dense, ln_gamma, ln_beta,
                  w_decoder, b_decoder, *, eps=1e-12, tm=1024, tv=1024,
                  compute_dtype=None, vmem_budget_bytes=44 * 1024 * 1024):
    """hidden_states: (B, S, H); w_dense: (H, H); w_decoder: (H, V).

    Weight layout is (in_features, out_features), i.e. torch_linear.weight.T.
    Returns logits of shape (B, S, V).
    """
    B, S, H = hidden_states.shape
    V = w_decoder.shape[1]
    M = B * S

    x2d = hidden_states.reshape(M, H)
    if compute_dtype is not None:
        x2d = x2d.astype(compute_dtype)
        w_dense = w_dense.astype(compute_dtype)
        w_decoder = w_decoder.astype(compute_dtype)
    dtype = x2d.dtype
    itemsize = jnp.dtype(dtype).itemsize

    # ---- tile selection (multiples of 8 / 128, shrunk to fit VMEM budget) ----
    tm = max(8, (min(tm, _round_up(M, 8)) // 8) * 8)
    tv = max(128, (min(tv, _round_up(V, 128)) // 128) * 128)

    def footprint(tm_, tv_):
        # double-buffered pipelined blocks + single-buffered invariants + scratch
        return (2 * tm_ * H * itemsize            # x rows
                + 1 * H * H * itemsize            # W_dense (grid-invariant)
                + 1 * 3 * H * itemsize            # b_dense / gamma / beta
                + 2 * H * tv_ * itemsize          # W_decoder tile
                + 2 * tv_ * itemsize              # b_decoder tile
                + 2 * tm_ * tv_ * itemsize        # output tile
                + tm_ * H * itemsize)             # transform scratch

    while footprint(tm, tv) > vmem_budget_bytes and (tm > 8 or tv > 128):
        if tv >= tm and tv > 128:
            tv = max(128, ((tv // 2) // 128) * 128)
        elif tm > 8:
            tm = max(8, ((tm // 2) // 8) * 8)
        else:
            break

    # Keep >= 2 row tiles when possible so the "parallel" row axis can be
    # sharded across both TensorCores on v7x.
    if _round_up(M, 8) <= tm and tm >= 16:
        tm = max(8, _round_up((M + 1) // 2, 8))

    Mp = _round_up(M, tm)
    Vp = _round_up(V, tv)

    # ---- pad ragged row / vocab extents (BERT vocab 30522 is ragged) --------
    if Mp != M:
        x2d = jnp.pad(x2d, ((0, Mp - M), (0, 0)))
    w_dec = w_decoder if Vp == V else jnp.pad(w_decoder, ((0, 0), (0, Vp - V)))
    b_dec = b_decoder if Vp == V else jnp.pad(b_decoder, (0, Vp - V))

    bd2 = b_dense.reshape(1, H)
    g2 = ln_gamma.reshape(1, H)
    be2 = ln_beta.reshape(1, H)
    bdec2 = b_dec.reshape(1, Vp)

    # ---- advisory cost (includes W_decoder re-streaming across row tiles) ---
    flops = 2 * Mp * H * H + 2 * Mp * H * Vp
    bytes_accessed = itemsize * (Mp * H + H * H + 3 * H + Vp
                                 + (Mp // tm) * H * Vp + Mp * Vp)
    cost = pl.CostEstimate(flops=flops, transcendentals=Mp * H,
                           bytes_accessed=bytes_accessed)

    # Explicit scoped-VMEM limit: above default scoped limits, below v7x's
    # 64 MiB physical capacity.
    vmem_limit = int(min(max(footprint(tm, tv) + (8 << 20), 32 << 20), 56 << 20))

    def run(single_buffer_invariants):
        if single_buffer_invariants:
            inv = lambda shape: pl.BlockSpec(shape, lambda m, v: (0, 0),
                                             pipeline_mode=pl.Buffered(1))
        else:
            inv = lambda shape: pl.BlockSpec(shape, lambda m, v: (0, 0))
        return pl.pallas_call(
            functools.partial(_mlm_head_kernel, eps=eps),
            out_shape=jax.ShapeDtypeStruct((Mp, Vp), dtype),
            grid_spec=pltpu.PrefetchScalarGridSpec(
                num_scalar_prefetch=0,
                grid=(Mp // tm, Vp // tv),
                in_specs=[
                    pl.BlockSpec((tm, H), lambda m, v: (m, 0)),    # x rows
                    inv((H, H)),                                   # W_dense
                    inv((1, H)),                                   # b_dense
                    inv((1, H)),                                   # LN gamma
                    inv((1, H)),                                   # LN beta
                    pl.BlockSpec((H, tv), lambda m, v: (0, v)),    # W_decoder tile
                    pl.BlockSpec((1, tv), lambda m, v: (0, v)),    # b_decoder tile
                ],
                out_specs=pl.BlockSpec((tm, tv), lambda m, v: (m, v)),
                scratch_shapes=[pltpu.VMEM((tm, H), dtype)],       # MXU-dtype cache
            ),
            compiler_params=pltpu.CompilerParams(
                dimension_semantics=("parallel", "arbitrary"),
                vmem_limit_bytes=vmem_limit),
            cost_estimate=cost,
        )(x2d, w_dense, bd2, g2, be2, w_dec, bdec2)

    try:
        out2d = run(True)
    except Exception:
        # pipeline_mode=pl.Buffered(1) unsupported on this build -> default
        # double buffering for the grid-invariant operands.
        out2d = run(False)

    return out2d[:M, :V].reshape(B, S, V)


def _reference(hidden_states, w_dense, b_dense, ln_gamma, ln_beta,
               w_decoder, b_decoder, eps=1e-12):
    h = hidden_states @ w_dense + b_dense
    h = jax.nn.gelu(h, approximate=False)          # exact erf GELU
    mean = h.mean(-1, keepdims=True)
    var = ((h - mean) ** 2).mean(-1, keepdims=True)
    h = (h - mean) / jnp.sqrt(var + eps) * ln_gamma + ln_beta
    return h @ w_decoder + b_decoder


if __name__ == "__main__":
    # Small config; ragged M=B*S=14 and vocab=150 exercise the padding paths.
    B, S, HIDDEN, VOCAB = 2, 7, 32, 150

    key = jax.random.PRNGKey(0)
    kx, kwd, kbd, kg, kbt, kwdec, kbdec = jax.random.split(key, 7)

    x = jax.random.normal(kx, (B, S, HIDDEN), dtype=jnp.float32)
    sc = 1.0 / math.sqrt(HIDDEN)
    w_dense = jax.random.uniform(kwd, (HIDDEN, HIDDEN), jnp.float32, -sc, sc)
    b_dense = jax.random.uniform(kbd, (HIDDEN,), jnp.float32, -sc, sc)
    ln_gamma = 1.0 + 0.1 * jax.random.normal(kg, (HIDDEN,), dtype=jnp.float32)
    ln_beta = 0.1 * jax.random.normal(kbt, (HIDDEN,), dtype=jnp.float32)
    w_decoder = jax.random.uniform(kwdec, (HIDDEN, VOCAB), jnp.float32, -sc, sc)
    b_decoder = jax.random.uniform(kbdec, (VOCAB,), jnp.float32, -sc, sc)

    ref = _reference(x, w_dense, b_dense, ln_gamma, ln_beta,
                     w_decoder, b_decoder)

    # f32 path: exactness check against the pure-JAX reference.
    out = bert_mlm_head(x, w_dense, b_dense, ln_gamma, ln_beta,
                        w_decoder, b_decoder)
    out = jax.block_until_ready(out)
    assert out.shape == (B, S, VOCAB)
    assert jnp.allclose(out, ref, atol=1e-4, rtol=1e-4), "f32 mismatch vs reference"

    # bf16 path (recommended production config: bf16 operands on the MXU).
    out_bf16 = bert_mlm_head(x, w_dense, b_dense, ln_gamma, ln_beta,
                             w_decoder, b_decoder, compute_dtype=jnp.bfloat16)
    out_bf16 = jax.block_until_ready(out_bf16)
    assert jnp.allclose(out_bf16.astype(jnp.float32), ref, atol=0.1, rtol=0.1), \
        "bf16 mismatch vs reference"

    print("KERNEL_OK")
</pallas_src>

<mosaic_0001>
module attributes {stable_mosaic.version = 11 : i64} {
  func.func @_mlm_head_kernel(%arg0: i32, %arg1: i32, %arg2: memref<8x32xf32, #tpu.memory_space<vmem>>, %arg3: memref<32x32xf32, #tpu.memory_space<vmem>>, %arg4: memref<1x32xf32, #tpu.memory_space<vmem>>, %arg5: memref<1x32xf32, #tpu.memory_space<vmem>>, %arg6: memref<1x32xf32, #tpu.memory_space<vmem>>, %arg7: memref<32x256xf32, #tpu.memory_space<vmem>>, %arg8: memref<1x256xf32, #tpu.memory_space<vmem>>, %arg9: memref<8x256xf32, #tpu.memory_space<vmem>>, %arg10: memref<8x32xf32, #tpu.memory_space<vmem>>) attributes {dimension_semantics = [#tpu.dimension_semantics<parallel>, #tpu.dimension_semantics<arbitrary>], iteration_bounds = array<i64: 2, 1>, scalar_prefetch = 0 : i64, scratch_operands = 1 : i64, tpu.core_type = #tpu.core_type<tc>, window_params = [{transform_indices = @transform_0, window_bounds = array<i64: 8, 32>}, {pipeline_mode = #tpu.pipeline_mode<synchronous>, transform_indices = @transform_1, window_bounds = array<i64: 32, 32>}, {pipeline_mode = #tpu.pipeline_mode<synchronous>, transform_indices = @transform_2, window_bounds = array<i64: 1, 32>}, {pipeline_mode = #tpu.pipeline_mode<synchronous>, transform_indices = @transform_3, window_bounds = array<i64: 1, 32>}, {pipeline_mode = #tpu.pipeline_mode<synchronous>, transform_indices = @transform_4, window_bounds = array<i64: 1, 32>}, {transform_indices = @transform_5, window_bounds = array<i64: 32, 256>}, {transform_indices = @transform_6, window_bounds = array<i64: 1, 256>}, {transform_indices = @transform_7, window_bounds = array<i64: 8, 256>}]} {
    %c0_i32 = arith.constant 0 : i32
    %0 = arith.cmpi eq, %arg1, %c0_i32 : i32
    %1 = arith.extui %0 : i1 to i32
    %c0_i32_0 = arith.constant 0 : i32
    %2 = arith.cmpi ne, %1, %c0_i32_0 : i32
    scf.if %2 {
      %c0_8 = arith.constant 0 : index
      %c0_9 = arith.constant 0 : index
      %10 = vector.load %arg2[%c0_8, %c0_9] : memref<8x32xf32, #tpu.memory_space<vmem>>, vector<8x32xf32>
      %c0_10 = arith.constant 0 : index
      %c0_11 = arith.constant 0 : index
      %11 = vector.load %arg3[%c0_10, %c0_11] : memref<32x32xf32, #tpu.memory_space<vmem>>, vector<32x32xf32>
      %cst_12 = arith.constant dense<0.000000e+00> : vector<8x32xf32>
      %12 = tpu.matmul %10, %11, %cst_12 {dimension_numbers = #tpu.dot_dimension_numbers<[1], [0], [0], [1], [0, 0, 1, 1], [], []>} : vector<8x32xf32>, vector<32x32xf32>, vector<8x32xf32> -> vector<8x32xf32>
      %c0_13 = arith.constant 0 : index
      %c0_14 = arith.constant 0 : index
      %13 = vector.load %arg4[%c0_13, %c0_14] : memref<1x32xf32, #tpu.memory_space<vmem>>, vector<1x32xf32>
      %14 = vector.broadcast %13 : vector<1x32xf32> to vector<8x32xf32>
      %15 = arith.addf %12, %14 : vector<8x32xf32>
      %cst_15 = arith.constant 5.000000e-01 : f32
      %16 = vector.broadcast %cst_15 : f32 to vector<8x32xf32>
      %17 = arith.mulf %16, %15 : vector<8x32xf32>
      %cst_16 = arith.constant 0.707106769 : f32
      %18 = vector.broadcast %cst_16 : f32 to vector<8x32xf32>
      %19 = arith.mulf %15, %18 : vector<8x32xf32>
      %20 = math.absf %19 : vector<8x32xf32>
      %cst_17 = arith.constant 0.327591091 : f32
      %21 = vector.broadcast %cst_17 : f32 to vector<8x32xf32>
      %22 = arith.mulf %21, %20 : vector<8x32xf32>
      %cst_18 = arith.constant 1.000000e+00 : f32
      %23 = vector.broadcast %cst_18 : f32 to vector<8x32xf32>
      %24 = arith.addf %23, %22 : vector<8x32xf32>
      %cst_19 = arith.constant 1.000000e+00 : f32
      %25 = vector.broadcast %cst_19 : f32 to vector<8x32xf32>
      %26 = arith.divf %25, %24 : vector<8x32xf32>
      %cst_20 = arith.constant 1.06140542 : f32
      %27 = vector.broadcast %cst_20 : f32 to vector<8x32xf32>
      %28 = arith.mulf %27, %26 : vector<8x32xf32>
      %cst_21 = arith.constant -1.45315206 : f32
      %29 = vector.broadcast %cst_21 : f32 to vector<8x32xf32>
      %30 = arith.addf %28, %29 : vector<8x32xf32>
      %31 = arith.mulf %30, %26 : vector<8x32xf32>
      %cst_22 = arith.constant 1.42141378 : f32
      %32 = vector.broadcast %cst_22 : f32 to vector<8x32xf32>
      %33 = arith.addf %31, %32 : vector<8x32xf32>
      %34 = arith.mulf %33, %26 : vector<8x32xf32>
      %cst_23 = arith.constant -0.284496725 : f32
      %35 = vector.broadcast %cst_23 : f32 to vector<8x32xf32>
      %36 = arith.addf %34, %35 : vector<8x32xf32>
      %37 = arith.mulf %36, %26 : vector<8x32xf32>
      %cst_24 = arith.constant 0.254829586 : f32
      %38 = vector.broadcast %cst_24 : f32 to vector<8x32xf32>
      %39 = arith.addf %37, %38 : vector<8x32xf32>
      %40 = arith.mulf %39, %26 : vector<8x32xf32>
      %cst_25 = arith.constant 0.000000e+00 : f32
      %41 = vector.broadcast %cst_25 : f32 to vector<8x32xf32>
      %42 = arith.subf %41, %20 : vector<8x32xf32>
      %43 = arith.mulf %42, %20 : vector<8x32xf32>
      %44 = math.exp %43 : vector<8x32xf32>
      %45 = arith.mulf %40, %44 : vector<8x32xf32>
      %cst_26 = arith.constant 1.000000e+00 : f32
      %46 = vector.broadcast %cst_26 : f32 to vector<8x32xf32>
      %47 = arith.subf %46, %45 : vector<8x32xf32>
      %cst_27 = arith.constant 0.000000e+00 : f32
      %48 = vector.broadcast %cst_27 : f32 to vector<8x32xf32>
      %49 = arith.cmpf oge, %19, %48 : vector<8x32xf32>
      %cst_28 = arith.constant 0.000000e+00 : f32
      %50 = vector.broadcast %cst_28 : f32 to vector<8x32xf32>
      %51 = arith.subf %50, %47 : vector<8x32xf32>
      %52 = arith.select %49, %47, %51 : vector<8x32xi1>, vector<8x32xf32>
      %cst_29 = arith.constant 1.000000e+00 : f32
      %53 = vector.broadcast %cst_29 : f32 to vector<8x32xf32>
      %54 = arith.addf %53, %52 : vector<8x32xf32>
      %55 = arith.mulf %17, %54 : vector<8x32xf32>
      %cst_30 = arith.constant dense<0.000000e+00> : vector<8xf32>
      %56 = vector.multi_reduction <add>, %55, %cst_30 [1] : vector<8x32xf32> to vector<8xf32>
      %57 = vector.shape_cast %56 : vector<8xf32> to vector<8x1xf32>
      %cst_31 = arith.constant 3.200000e+01 : f32
      %58 = vector.broadcast %cst_31 : f32 to vector<8x1xf32>
      %59 = arith.divf %57, %58 : vector<8x1xf32>
      %60 = vector.broadcast %59 : vector<8x1xf32> to vector<8x32xf32>
      %61 = arith.subf %55, %60 : vector<8x32xf32>
      %62 = arith.mulf %61, %61 : vector<8x32xf32>
      %cst_32 = arith.constant dense<0.000000e+00> : vector<8xf32>
      %63 = vector.multi_reduction <add>, %62, %cst_32 [1] : vector<8x32xf32> to vector<8xf32>
      %64 = vector.shape_cast %63 : vector<8xf32> to vector<8x1xf32>
      %cst_33 = arith.constant 3.200000e+01 : f32
      %65 = vector.broadcast %cst_33 : f32 to vector<8x1xf32>
      %66 = arith.divf %64, %65 : vector<8x1xf32>
      %cst_34 = arith.constant 9.99999996E-13 : f32
      %67 = vector.broadcast %cst_34 : f32 to vector<8x1xf32>
      %68 = arith.addf %66, %67 : vector<8x1xf32>
      %69 = math.rsqrt %68 : vector<8x1xf32>
      %70 = vector.broadcast %69 : vector<8x1xf32> to vector<8x32xf32>
      %71 = arith.mulf %61, %70 : vector<8x32xf32>
      %c0_35 = arith.constant 0 : index
      %c0_36 = arith.constant 0 : index
      %72 = vector.load %arg5[%c0_35, %c0_36] : memref<1x32xf32, #tpu.memory_space<vmem>>, vector<1x32xf32>
      %73 = vector.broadcast %72 : vector<1x32xf32> to vector<8x32xf32>
      %74 = arith.mulf %71, %73 : vector<8x32xf32>
      %c0_37 = arith.constant 0 : index
      %c0_38 = arith.constant 0 : index
      %75 = vector.load %arg6[%c0_37, %c0_38] : memref<1x32xf32, #tpu.memory_space<vmem>>, vector<1x32xf32>
      %76 = vector.broadcast %75 : vector<1x32xf32> to vector<8x32xf32>
      %77 = arith.addf %74, %76 : vector<8x32xf32>
      %c0_39 = arith.constant 0 : index
      %c0_40 = arith.constant 0 : index
      %78 = vector.load %arg10[%c0_39, %c0_40] : memref<8x32xf32, #tpu.memory_space<vmem>>, vector<8x32xf32>
      tpu.vector_store %arg10[%c0_39, %c0_40], %77 {strides = array<i32>} : memref<8x32xf32, #tpu.memory_space<vmem>>, vector<8x32xf32>,
    } else {
    }
    %c0 = arith.constant 0 : index
    %c0_1 = arith.constant 0 : index
    %3 = vector.load %arg10[%c0, %c0_1] : memref<8x32xf32, #tpu.memory_space<vmem>>, vector<8x32xf32>
    %c0_2 = arith.constant 0 : index
    %c0_3 = arith.constant 0 : index
    %4 = vector.load %arg7[%c0_2, %c0_3] : memref<32x256xf32, #tpu.memory_space<vmem>>, vector<32x256xf32>
    %cst = arith.constant dense<0.000000e+00> : vector<8x256xf32>
    %5 = tpu.matmul %3, %4, %cst {dimension_numbers = #tpu.dot_dimension_numbers<[1], [0], [0], [1], [0, 0, 1, 1], [], []>} : vector<8x32xf32>, vector<32x256xf32>, vector<8x256xf32> -> vector<8x256xf32>
    %c0_4 = arith.constant 0 : index
    %c0_5 = arith.constant 0 : index
    %6 = vector.load %arg8[%c0_4, %c0_5] : memref<1x256xf32, #tpu.memory_space<vmem>>, vector<1x256xf32>
    %7 = vector.broadcast %6 : vector<1x256xf32> to vector<8x256xf32>
    %8 = arith.addf %5, %7 : vector<8x256xf32>
    %c0_6 = arith.constant 0 : index
    %c0_7 = arith.constant 0 : index
    %9 = vector.load %arg9[%c0_6, %c0_7] : memref<8x256xf32, #tpu.memory_space<vmem>>, vector<8x256xf32>
    tpu.vector_store %arg9[%c0_6, %c0_7], %8 {strides = array<i32>} : memref<8x256xf32, #tpu.memory_space<vmem>>, vector<8x256xf32>,
    return
  }
  func.func @transform_0(%arg0: i32, %arg1: i32) -> (i32, i32) {
    %c0_i32 = arith.constant 0 : i32
    %c0_i32_0 = arith.constant 0 : i32
    return %arg0, %c0_i32 : i32, i32
  }
  func.func @transform_1(%arg0: i32, %arg1: i32) -> (i32, i32) {
    %c0_i32 = arith.constant 0 : i32
    %c0_i32_0 = arith.constant 0 : i32
    %c0_i32_1 = arith.constant 0 : i32
    return %c0_i32, %c0_i32_0 : i32, i32
  }
  func.func @transform_2(%arg0: i32, %arg1: i32) -> (i32, i32) {
    %c0_i32 = arith.constant 0 : i32
    %c0_i32_0 = arith.constant 0 : i32
    %c0_i32_1 = arith.constant 0 : i32
    return %c0_i32, %c0_i32_0 : i32, i32
  }
  func.func @transform_3(%arg0: i32, %arg1: i32) -> (i32, i32) {
    %c0_i32 = arith.constant 0 : i32
    %c0_i32_0 = arith.constant 0 : i32
    %c0_i32_1 = arith.constant 0 : i32
    return %c0_i32, %c0_i32_0 : i32, i32
  }
  func.func @transform_4(%arg0: i32, %arg1: i32) -> (i32, i32) {
    %c0_i32 = arith.constant 0 : i32
    %c0_i32_0 = arith.constant 0 : i32
    %c0_i32_1 = arith.constant 0 : i32
    return %c0_i32, %c0_i32_0 : i32, i32
  }
  func.func @transform_5(%arg0: i32, %arg1: i32) -> (i32, i32) {
    %c0_i32 = arith.constant 0 : i32
    %c0_i32_0 = arith.constant 0 : i32
    return %c0_i32, %arg1 : i32, i32
  }
  func.func @transform_6(%arg0: i32, %arg1: i32) -> (i32, i32) {
    %c0_i32 = arith.constant 0 : i32
    %c0_i32_0 = arith.constant 0 : i32
    return %c0_i32, %arg1 : i32, i32
  }
  func.func @transform_7(%arg0: i32, %arg1: i32) -> (i32, i32) {
    %c0_i32 = arith.constant 0 : i32
    return %arg0, %arg1 : i32, i32
  }
}

module attributes {stable_mosaic.version = 11 : i64} {
  func.func @_mlm_head_kernel(%arg0: i32, %arg1: i32, %arg2: memref<8x32xf32, #tpu.memory_space<vmem>>, %arg3: memref<32x32xf32, #tpu.memory_space<vmem>>, %arg4: memref<1x32xf32, #tpu.memory_space<vmem>>, %arg5: memref<1x32xf32, #tpu.memory_space<vmem>>, %arg6: memref<1x32xf32, #tpu.memory_space<vmem>>, %arg7: memref<32x256xf32, #tpu.memory_space<vmem>>, %arg8: memref<1x256xf32, #tpu.memory_space<vmem>>, %arg9: memref<8x256xf32, #tpu.memory_space<vmem>>, %arg10: memref<8x32xf32, #tpu.memory_space<vmem>>) attributes {dimension_semantics = [#tpu.dimension_semantics<parallel>, #tpu.dimension_semantics<arbitrary>], iteration_bounds = array<i64: 2, 1>, scalar_prefetch = 0 : i64, scratch_operands = 1 : i64, tpu.core_type = #tpu.core_type<tc>, window_params = [{transform_indices = @transform_0, window_bounds = array<i64: 8, 32>}, {pipeline_mode = #tpu.pipeline_mode<synchronous>, transform_indices = @transform_1, window_bounds = array<i64: 32, 32>}, {pipeline_mode = #tpu.pipeline_mode<synchronous>, transform_indices = @transform_2, window_bounds = array<i64: 1, 32>}, {pipeline_mode = #tpu.pipeline_mode<synchronous>, transform_indices = @transform_3, window_bounds = array<i64: 1, 32>}, {pipeline_mode = #tpu.pipeline_mode<synchronous>, transform_indices = @transform_4, window_bounds = array<i64: 1, 32>}, {transform_indices = @transform_5, window_bounds = array<i64: 32, 256>}, {transform_indices = @transform_6, window_bounds = array<i64: 1, 256>}, {transform_indices = @transform_7, window_bounds = array<i64: 8, 256>}]} {
    %c0_i32 = arith.constant 0 : i32
    %0 = arith.cmpi eq, %arg1, %c0_i32 : i32
    %1 = arith.extui %0 : i1 to i32
    %c0_i32_0 = arith.constant 0 : i32
    %2 = arith.cmpi ne, %1, %c0_i32_0 : i32
    scf.if %2 {
      %c0_8 = arith.constant 0 : index
      %c0_9 = arith.constant 0 : index
      %10 = vector.load %arg2[%c0_8, %c0_9] : memref<8x32xf32, #tpu.memory_space<vmem>>, vector<8x32xf32>
      %c0_10 = arith.constant 0 : index
      %c0_11 = arith.constant 0 : index
      %11 = vector.load %arg3[%c0_10, %c0_11] : memref<32x32xf32, #tpu.memory_space<vmem>>, vector<32x32xf32>
      %cst_12 = arith.constant dense<0.000000e+00> : vector<8x32xf32>
      %12 = tpu.matmul %10, %11, %cst_12 {dimension_numbers = #tpu.dot_dimension_numbers<[1], [0], [0], [1], [0, 0, 1, 1], [], []>} : vector<8x32xf32>, vector<32x32xf32>, vector<8x32xf32> -> vector<8x32xf32>
      %c0_13 = arith.constant 0 : index
      %c0_14 = arith.constant 0 : index
      %13 = vector.load %arg4[%c0_13, %c0_14] : memref<1x32xf32, #tpu.memory_space<vmem>>, vector<1x32xf32>
      %14 = vector.broadcast %13 : vector<1x32xf32> to vector<8x32xf32>
      %15 = arith.addf %12, %14 : vector<8x32xf32>
      %cst_15 = arith.constant 5.000000e-01 : f32
      %16 = vector.broadcast %cst_15 : f32 to vector<8x32xf32>
      %17 = arith.mulf %16, %15 : vector<8x32xf32>
      %cst_16 = arith.constant 0.707106769 : f32
      %18 = vector.broadcast %cst_16 : f32 to vector<8x32xf32>
      %19 = arith.mulf %15, %18 : vector<8x32xf32>
      %20 = math.absf %19 : vector<8x32xf32>
      %cst_17 = arith.constant 0.327591091 : f32
      %21 = vector.broadcast %cst_17 : f32 to vector<8x32xf32>
      %22 = arith.mulf %21, %20 : vector<8x32xf32>
      %cst_18 = arith.constant 1.000000e+00 : f32
      %23 = vector.broadcast %cst_18 : f32 to vector<8x32xf32>
      %24 = arith.addf %23, %22 : vector<8x32xf32>
      %cst_19 = arith.constant 1.000000e+00 : f32
      %25 = vector.broadcast %cst_19 : f32 to vector<8x32xf32>
      %26 = arith.divf %25, %24 : vector<8x32xf32>
      %cst_20 = arith.constant 1.06140542 : f32
      %27 = vector.broadcast %cst_20 : f32 to vector<8x32xf32>
      %28 = arith.mulf %27, %26 : vector<8x32xf32>
      %cst_21 = arith.constant -1.45315206 : f32
      %29 = vector.broadcast %cst_21 : f32 to vector<8x32xf32>
      %30 = arith.addf %28, %29 : vector<8x32xf32>
      %31 = arith.mulf %30, %26 : vector<8x32xf32>
      %cst_22 = arith.constant 1.42141378 : f32
      %32 = vector.broadcast %cst_22 : f32 to vector<8x32xf32>
      %33 = arith.addf %31, %32 : vector<8x32xf32>
      %34 = arith.mulf %33, %26 : vector<8x32xf32>
      %cst_23 = arith.constant -0.284496725 : f32
      %35 = vector.broadcast %cst_23 : f32 to vector<8x32xf32>
      %36 = arith.addf %34, %35 : vector<8x32xf32>
      %37 = arith.mulf %36, %26 : vector<8x32xf32>
      %cst_24 = arith.constant 0.254829586 : f32
      %38 = vector.broadcast %cst_24 : f32 to vector<8x32xf32>
      %39 = arith.addf %37, %38 : vector<8x32xf32>
      %40 = arith.mulf %39, %26 : vector<8x32xf32>
      %cst_25 = arith.constant 0.000000e+00 : f32
      %41 = vector.broadcast %cst_25 : f32 to vector<8x32xf32>
      %42 = arith.subf %41, %20 : vector<8x32xf32>
      %43 = arith.mulf %42, %20 : vector<8x32xf32>
      %44 = math.exp %43 : vector<8x32xf32>
      %45 = arith.mulf %40, %44 : vector<8x32xf32>
      %cst_26 = arith.constant 1.000000e+00 : f32
      %46 = vector.broadcast %cst_26 : f32 to vector<8x32xf32>
      %47 = arith.subf %46, %45 : vector<8x32xf32>
      %cst_27 = arith.constant 0.000000e+00 : f32
      %48 = vector.broadcast %cst_27 : f32 to vector<8x32xf32>
      %49 = arith.cmpf oge, %19, %48 : vector<8x32xf32>
      %cst_28 = arith.constant 0.000000e+00 : f32
      %50 = vector.broadcast %cst_28 : f32 to vector<8x32xf32>
      %51 = arith.subf %50, %47 : vector<8x32xf32>
      %52 = arith.select %49, %47, %51 : vector<8x32xi1>, vector<8x32xf32>
      %cst_29 = arith.constant 1.000000e+00 : f32
      %53 = vector.broadcast %cst_29 : f32 to vector<8x32xf32>
      %54 = arith.addf %53, %52 : vector<8x32xf32>
      %55 = arith.mulf %17, %54 : vector<8x32xf32>
      %cst_30 = arith.constant dense<0.000000e+00> : vector<8xf32>
      %56 = vector.multi_reduction <add>, %55, %cst_30 [1] : vector<8x32xf32> to vector<8xf32>
      %57 = vector.shape_cast %56 : vector<8xf32> to vector<8x1xf32>
      %cst_31 = arith.constant 3.200000e+01 : f32
      %58 = vector.broadcast %cst_31 : f32 to vector<8x1xf32>
      %59 = arith.divf %57, %58 : vector<8x1xf32>
      %60 = vector.broadcast %59 : vector<8x1xf32> to vector<8x32xf32>
      %61 = arith.subf %55, %60 : vector<8x32xf32>
      %62 = arith.mulf %61, %61 : vector<8x32xf32>
      %cst_32 = arith.constant dense<0.000000e+00> : vector<8xf32>
      %63 = vector.multi_reduction <add>, %62, %cst_32 [1] : vector<8x32xf32> to vector<8xf32>
      %64 = vector.shape_cast %63 : vector<8xf32> to vector<8x1xf32>
      %cst_33 = arith.constant 3.200000e+01 : f32
      %65 = vector.broadcast %cst_33 : f32 to vector<8x1xf32>
      %66 = arith.divf %64, %65 : vector<8x1xf32>
      %cst_34 = arith.constant 9.99999996E-13 : f32
      %67 = vector.broadcast %cst_34 : f32 to vector<8x1xf32>
      %68 = arith.addf %66, %67 : vector<8x1xf32>
      %69 = math.rsqrt %68 : vector<8x1xf32>
      %70 = vector.broadcast %69 : vector<8x1xf32> to vector<8x32xf32>
      %71 = arith.mulf %61, %70 : vector<8x32xf32>
      %c0_35 = arith.constant 0 : index
      %c0_36 = arith.constant 0 : index
      %72 = vector.load %arg5[%c0_35, %c0_36] : memref<1x32xf32, #tpu.memory_space<vmem>>, vector<1x32xf32>
      %73 = vector.broadcast %72 : vector<1x32xf32> to vector<8x32xf32>
      %74 = arith.mulf %71, %73 : vector<8x32xf32>
      %c0_37 = arith.constant 0 : index
      %c0_38 = arith.constant 0 : index
      %75 = vector.load %arg6[%c0_37, %c0_38] : memref<1x32xf32, #tpu.memory_space<vmem>>, vector<1x32xf32>
      %76 = vector.broadcast %75 : vector<1x32xf32> to vector<8x32xf32>
      %77 = arith.addf %74, %76 : vector<8x32xf32>
      %c0_39 = arith.constant 0 : index
      %c0_40 = arith.constant 0 : index
      %78 = vector.load %arg10[%c0_39, %c0_40] : memref<8x32xf32, #tpu.memory_space<vmem>>, vector<8x32xf32>
      tpu.vector_store %arg10[%c0_39, %c0_40], %77 {strides = array<i32>} : memref<8x32xf32, #tpu.memory_space<vmem>>, vector<8x32xf32>,
    } else {
    }
    %c0 = arith.constant 0 : index
    %c0_1 = arith.constant 0 : index
    %3 = vector.load %arg10[%c0, %c0_1] : memref<8x32xf32, #tpu.memory_space<vmem>>, vector<8x32xf32>
    %c0_2 = arith.constant 0 : index
    %c0_3 = arith.constant 0 : index
    %4 = vector.load %arg7[%c0_2, %c0_3] : memref<32x256xf32, #tpu.memory_space<vmem>>, vector<32x256xf32>
    %cst = arith.constant dense<0.000000e+00> : vector<8x256xf32>
    %5 = tpu.matmul %3, %4, %cst {dimension_numbers = #tpu.dot_dimension_numbers<[1], [0], [0], [1], [0, 0, 1, 1], [], []>} : vector<8x32xf32>, vector<32x256xf32>, vector<8x256xf32> -> vector<8x256xf32>
    %c0_4 = arith.constant 0 : index
    %c0_5 = arith.constant 0 : index
    %6 = vector.load %arg8[%c0_4, %c0_5] : memref<1x256xf32, #tpu.memory_space<vmem>>, vector<1x256xf32>
    %7 = vector.broadcast %6 : vector<1x256xf32> to vector<8x256xf32>
    %8 = arith.addf %5, %7 : vector<8x256xf32>
    %c0_6 = arith.constant 0 : index
    %c0_7 = arith.constant 0 : index
    %9 = vector.load %arg9[%c0_6, %c0_7] : memref<8x256xf32, #tpu.memory_space<vmem>>, vector<8x256xf32>
    tpu.vector_store %arg9[%c0_6, %c0_7], %8 {strides = array<i32>} : memref<8x256xf32, #tpu.memory_space<vmem>>, vector<8x256xf32>,
    return
  }
  func.func @transform_0(%arg0: i32, %arg1: i32) -> (i32, i32) {
    %c0_i32 = arith.constant 0 : i32
    %c0_i32_0 = arith.constant 0 : i32
    return %arg0, %c0_i32 : i32, i32
  }
  func.func @transform_1(%arg0: i32, %arg1: i32) -> (i32, i32) {
    %c0_i32 = arith.constant 0 : i32
    %c0_i32_0 = arith.constant 0 : i32
    %c0_i32_1 = arith.constant 0 : i32
    return %c0_i32, %c0_i32_0 : i32, i32
  }
  func.func @transform_2(%arg0: i32, %arg1: i32) -> (i32, i32) {
    %c0_i32 = arith.constant 0 : i32
    %c0_i32_0 = arith.constant 0 : i32
    %c0_i32_1 = arith.constant 0 : i32
    return %c0_i32, %c0_i32_0 : i32, i32
  }
  func.func @transform_3(%arg0: i32, %arg1: i32) -> (i32, i32) {
    %c0_i32 = arith.constant 0 : i32
    %c0_i32_0 = arith.constant 0 : i32
    %c0_i32_1 = arith.constant 0 : i32
    return %c0_i32, %c0_i32_0 : i32, i32
  }
  func.func @transform_4(%arg0: i32, %arg1: i32) -> (i32, i32) {
    %c0_i32 = arith.constant 0 : i32
    %c0_i32_0 = arith.constant 0 : i32
    %c0_i32_1 = arith.constant 0 : i32
    return %c0_i32, %c0_i32_0 : i32, i32
  }
  func.func @transform_5(%arg0: i32, %arg1: i32) -> (i32, i32) {
    %c0_i32 = arith.constant 0 : i32
    %c0_i32_0 = arith.constant 0 : i32
    return %c0_i32, %arg1 : i32, i32
  }
  func.func @transform_6(%arg0: i32, %arg1: i32) -> (i32, i32) {
    %c0_i32 = arith.constant 0 : i32
    %c0_i32_0 = arith.constant 0 : i32
    return %c0_i32, %arg1 : i32, i32
  }
  func.func @transform_7(%arg0: i32, %arg1: i32) -> (i32, i32) {
    %c0_i32 = arith.constant 0 : i32
    return %arg0, %arg1 : i32, i32
  }
}

</mosaic_0001>

<llo_original>
// kernel: tpu_custom_call.1
$region0: #{tpu_custom_call.1}
  #allocation0 [shape = 'u32[]', space=smem, size = 0x4, offset = 0x4, fixed_abs, tag = 'smem constant byte address 0x4 - core index']
  #allocation1 [shape = 'u32[144,128]{1,0:T(1,128)}', space=vmem, size = 0x12000, scoped, tag = 'internal scratch']
  #allocation2 [shape = 'f32[8,32]{1,0:T(8,128)}', space=vmem, size = 0x1000, scoped, tag = 'scratch operand']
  %s0 = inlined_call_operand.hbm [shape: f32[16,32], index: 0, kind: input, shape index: {}]
  %s1 = inlined_call_operand.hbm [shape: f32[32,32], index: 1, kind: input, shape index: {}]
  %s2 = inlined_call_operand.vmem [shape: f32[1,32], index: 2, kind: input, shape index: {}]
  %s3 = inlined_call_operand.vmem [shape: f32[1,32], index: 3, kind: input, shape index: {}]
  %s4 = inlined_call_operand.vmem [shape: f32[1,32], index: 4, kind: input, shape index: {}]
  %s5 = inlined_call_operand.hbm [shape: f32[32,256], index: 5, kind: input, shape index: {}]
  %s6 = inlined_call_operand.vmem [shape: f32[1,256], index: 6, kind: input, shape index: {}]
  %s7 = inlined_call_operand.hbm [shape: f32[16,256], index: 7, kind: output, shape index: {}]
  %s8 = sld [smem:[#allocation0]]
  $region77: #{tpu_custom_call.1} parent=0
    _
  %s10 = ssub.s32 1, %s8
  %s11 = scalar_select 0, %s10, %s8
  $region1: #{tpu_custom_call.1} parent=0
    #allocation3 [shape = 'u8[8192]{0}', space=vmem, size = 0x2000, scoped, tag = 'input window, operand 0']
    #allocation4 [shape = 's32[2]{0}', space=sflag, size = 0x8, scoped, tag = 'scoped memory for tpu_custom_call.1']
    #allocation5 [shape = 's32[2]{0}', space=sflag, size = 0x8, scoped, tag = 'scoped memory for tpu_custom_call.1']
    #allocation6 [shape = 'u8[16384]{0}', space=vmem, size = 0x4000, scoped, tag = 'input window, operand 1, single buffered']
    #allocation7 [shape = 's32[1]{0}', space=sflag, size = 0x4, scoped, tag = 'scoped memory for tpu_custom_call.1']
    #allocation8 [shape = 'u8[32768]{0}', space=vmem, size = 0x8000, scoped, tag = 'input window, operand 5, single buffered']
    #allocation9 [shape = 'u8[16384]{0}', space=vmem, size = 0x4000, scoped, tag = 'output window, operand 0']
    %12 = vsyncpa [#allocation4], 0
    %s13 = scalar_lea.sflag [#allocation4], 1
    %14 = vsyncpa %s13, 0
    %15 = vsyncpa [#allocation7], 0
    %16 = vsyncpa [#allocation5], 0
    %s17 = scalar_lea.sflag [#allocation5], 1
    %18 = vsyncpa %s17, 0
    loop: start=0, step=1, limit=4
    $region2: #{tpu_custom_call.1} parent=1 // loop_pre_header
      _
    $region3: #{tpu_custom_call.1} parent=1 // loop_header
      %s20 = sphi 0, %s24
      %p21 = scmp.ge.s32.totalorder %s20, 4
      %s27 = sphi 0, %s39
      %s28 = sphi 0, %s35
      %s29 = sphi 0, %s27
      %s30 = sphi 0, %s28
      %s31 = sphi 0, %s29
      %s32 = sphi 0, %s30
      %s42 = sphi 0, %s44
      %s45 = sphi 0, %s42
      %s46 = sphi 0, %s45
      %s62 = sphi 0, %s46
      %s66 = sphi 0, %s66
      %s68 = sphi 0, %s66
      %s69 = sphi 0, %s68
      %s83 = sphi 0, %s69
      %s87 = sphi 0, %s87
      %s89 = sphi 0, %s87
      %s90 = sphi 0, %s89
      %s104 = sphi 0, %s90
      %s108 = sphi 0, %s108
      %s110 = sphi 0, %s108
      %s111 = sphi 0, %s110
      %s125 = sphi 0, %s111
      %s129 = sphi 0, %s129
      %s131 = sphi 0, %s129
      %s132 = sphi 0, %s131
      %s146 = sphi 0, %s132
      %s152 = sphi 0, %s154
      %s155 = sphi 0, %s152
      %s156 = sphi 0, %s155
      %s172 = sphi 0, %s156
      %s178 = sphi 0, %s180
      %s181 = sphi 0, %s178
      %s182 = sphi 0, %s181
      %s198 = sphi 0, %s182
      %s206 = sphi 0, %s208
      %s209 = sphi 0, %s206
      %s210 = sphi 0, %s209
      %s226 = sphi 0, %s210
    $region4: #{tpu_custom_call.1} parent=1 // loop_header_branch
      %23 = sbr.rel (%p21) target = $region8
    $region5: #{tpu_custom_call.1} parent=1 // loop_body
      %s25 = ssub.s32 %s20, 1
      %s26 = ssub.s32 %s20, 2
      %s33 = sadd.s32 1, %s28
      %p34 = scmp.ge.s32.totalorder %s33, 1
      %s35 = scalar_select %p34, 0, %s33
      %s36 = sadd.s32 1, %s27
      %s37 = scalar_select %p34, %s36, %s27
      %p38 = scmp.ge.s32.totalorder %s37, 2
      %s39 = scalar_select %p38, 0, %s37
      %s40 = ssub.s32 %s27, %s39
      %p41 = scmp.eq.s32.totalorder %s40, 0
      %s43 = sadd.s32 %s42, 1
      %s44 = scalar_select %p41, %s42, %s43
      %p47 = pneg %p41
      %p48 = scmp.eq.s32.totalorder %s20, 1
      %p49 = por %p47, %p48
      %p50 = scmp.ne.s32.totalorder %s42, %s45
      %p51 = scmp.eq.s32.totalorder %s20, 0
      %p52 = por %p50, %p51
      %p53 = scmp.ne.s32.totalorder %s42, %s45
      %p54 = scmp.eq.s32.totalorder %s25, 1
      %p55 = por %p53, %p54
      %p56 = scmp.ne.s32.totalorder %s45, %s46
      %p57 = scmp.eq.s32.totalorder %s25, 0
      %p58 = por %p56, %p57
      %p59 = scmp.ne.s32.totalorder %s45, %s46
      %p60 = scmp.eq.s32.totalorder %s26, 1
      %p61 = por %p59, %p60
      %p63 = scmp.ne.s32.totalorder %s46, %s62
      %p64 = scmp.eq.s32.totalorder %s26, 0
      %p65 = por %p63, %p64
      %s67 = sadd.s32 %s66, 1
      %p70 = scmp.eq.s32.totalorder %s20, 1
      %p71 = scmp.ne.s32.totalorder %s66, %s68
      %p72 = scmp.eq.s32.totalorder %s20, 0
      %p73 = por %p71, %p72
      %p74 = scmp.ne.s32.totalorder %s66, %s68
      %p75 = scmp.eq.s32.totalorder %s25, 1
      %p76 = por %p74, %p75
      %p77 = scmp.ne.s32.totalorder %s68, %s69
      %p78 = scmp.eq.s32.totalorder %s25, 0
      %p79 = por %p77, %p78
      %p80 = scmp.ne.s32.totalorder %s68, %s69
      %p81 = scmp.eq.s32.totalorder %s26, 1
      %p82 = por %p80, %p81
      %p84 = scmp.ne.s32.totalorder %s69, %s83
      %p85 = scmp.eq.s32.totalorder %s26, 0
      %p86 = por %p84, %p85
      %s88 = sadd.s32 %s87, 1
      %p91 = scmp.eq.s32.totalorder %s20, 1
      %p92 = scmp.ne.s32.totalorder %s87, %s89
      %p93 = scmp.eq.s32.totalorder %s20, 0
      %p94 = por %p92, %p93
      %p95 = scmp.ne.s32.totalorder %s87, %s89
      %p96 = scmp.eq.s32.totalorder %s25, 1
      %p97 = por %p95, %p96
      %p98 = scmp.ne.s32.totalorder %s89, %s90
      %p99 = scmp.eq.s32.totalorder %s25, 0
      %p100 = por %p98, %p99
      %p101 = scmp.ne.s32.totalorder %s89, %s90
      %p102 = scmp.eq.s32.totalorder %s26, 1
      %p103 = por %p101, %p102
      %p105 = scmp.ne.s32.totalorder %s90, %s104
      %p106 = scmp.eq.s32.totalorder %s26, 0
      %p107 = por %p105, %p106
      %s109 = sadd.s32 %s108, 1
      %p112 = scmp.eq.s32.totalorder %s20, 1
      %p113 = scmp.ne.s32.totalorder %s108, %s110
      %p114 = scmp.eq.s32.totalorder %s20, 0
      %p115 = por %p113, %p114
      %p116 = scmp.ne.s32.totalorder %s108, %s110
      %p117 = scmp.eq.s32.totalorder %s25, 1
      %p118 = por %p116, %p117
      %p119 = scmp.ne.s32.totalorder %s110, %s111
      %p120 = scmp.eq.s32.totalorder %s25, 0
      %p121 = por %p119, %p120
      %p122 = scmp.ne.s32.totalorder %s110, %s111
      %p123 = scmp.eq.s32.totalorder %s26, 1
      %p124 = por %p122, %p123
      %p126 = scmp.ne.s32.totalorder %s111, %s125
      %p127 = scmp.eq.s32.totalorder %s26, 0
      %p128 = por %p126, %p127
      %s130 = sadd.s32 %s129, 1
      %p133 = scmp.eq.s32.totalorder %s20, 1
      %p134 = scmp.ne.s32.totalorder %s129, %s131
      %p135 = scmp.eq.s32.totalorder %s20, 0
      %p136 = por %p134, %p135
      %p137 = scmp.ne.s32.totalorder %s129, %s131
      %p138 = scmp.eq.s32.totalorder %s25, 1
      %p139 = por %p137, %p138
      %p140 = scmp.ne.s32.totalorder %s131, %s132
      %p141 = scmp.eq.s32.totalorder %s25, 0
      %p142 = por %p140, %p141
      %p143 = scmp.ne.s32.totalorder %s131, %s132
      %p144 = scmp.eq.s32.totalorder %s26, 1
      %p145 = por %p143, %p144
      %p147 = scmp.ne.s32.totalorder %s132, %s146
      %p148 = scmp.eq.s32.totalorder %s26, 0
      %p149 = por %p147, %p148
      %s150 = ssub.s32 %s28, %s35
      %p151 = scmp.eq.s32.totalorder %s150, 0
      %s153 = sadd.s32 %s152, 1
      %s154 = scalar_select %p151, %s152, %s153
      %p157 = pneg %p151
      %p158 = scmp.eq.s32.totalorder %s20, 1
      %p159 = por %p157, %p158
      %p160 = scmp.ne.s32.totalorder %s152, %s155
      %p161 = scmp.eq.s32.totalorder %s20, 0
      %p162 = por %p160, %p161
      %p163 = scmp.ne.s32.totalorder %s152, %s155
      %p164 = scmp.eq.s32.totalorder %s25, 1
      %p165 = por %p163, %p164
      %p166 = scmp.ne.s32.totalorder %s155, %s156
      %p167 = scmp.eq.s32.totalorder %s25, 0
      %p168 = por %p166, %p167
      %p169 = scmp.ne.s32.totalorder %s155, %s156
      %p170 = scmp.eq.s32.totalorder %s26, 1
      %p171 = por %p169, %p170
      %p173 = scmp.ne.s32.totalorder %s156, %s172
      %p174 = scmp.eq.s32.totalorder %s26, 0
      %p175 = por %p173, %p174
      %s176 = ssub.s32 %s28, %s35
      %p177 = scmp.eq.s32.totalorder %s176, 0
      %s179 = sadd.s32 %s178, 1
      %s180 = scalar_select %p177, %s178, %s179
      %p183 = pneg %p177
      %p184 = scmp.eq.s32.totalorder %s20, 1
      %p185 = por %p183, %p184
      %p186 = scmp.ne.s32.totalorder %s178, %s181
      %p187 = scmp.eq.s32.totalorder %s20, 0
      %p188 = por %p186, %p187
      %p189 = scmp.ne.s32.totalorder %s178, %s181
      %p190 = scmp.eq.s32.totalorder %s25, 1
      %p191 = por %p189, %p190
      %p192 = scmp.ne.s32.totalorder %s181, %s182
      %p193 = scmp.eq.s32.totalorder %s25, 0
      %p194 = por %p192, %p193
      %p195 = scmp.ne.s32.totalorder %s181, %s182
      %p196 = scmp.eq.s32.totalorder %s26, 1
      %p197 = por %p195, %p196
      %p199 = scmp.ne.s32.totalorder %s182, %s198
      %p200 = scmp.eq.s32.totalorder %s26, 0
      %p201 = por %p199, %p200
      %s202 = ssub.s32 %s27, %s39
      %s203 = ssub.s32 %s28, %s35
      %s204 = sor.u32 %s202, %s203
      %p205 = scmp.eq.s32.totalorder %s204, 0
      %s207 = sadd.s32 %s206, 1
      %s208 = scalar_select %p205, %s206, %s207
      %p211 = pneg %p205
      %p212 = scmp.eq.s32.totalorder %s20, 1
      %p213 = por %p211, %p212
      %p214 = scmp.ne.s32.totalorder %s206, %s209
      %p215 = scmp.eq.s32.totalorder %s20, 0
      %p216 = por %p214, %p215
      %p217 = scmp.ne.s32.totalorder %s206, %s209
      %p218 = scmp.eq.s32.totalorder %s25, 1
      %p219 = por %p217, %p218
      %p220 = scmp.ne.s32.totalorder %s209, %s210
      %p221 = scmp.eq.s32.totalorder %s25, 0
      %p222 = por %p220, %p221
      %p223 = scmp.ne.s32.totalorder %s209, %s210
      %p224 = scmp.eq.s32.totalorder %s26, 1
      %p225 = por %p223, %p224
      %p227 = scmp.ne.s32.totalorder %s210, %s226
      %p228 = scmp.eq.s32.totalorder %s26, 0
      %p229 = por %p227, %p228
      %p230 = scmp.le.s32.totalorder 1, %s20
      %p231 = scmp.lt.s32.totalorder %s20, 3
      %p232 = pnand %p230, %p231
      %p233 = pneg %p232
      // Predicated region
      $region9: #{tpu_custom_call.1} parent=5 // pred_check
        _
      $region10: #{tpu_custom_call.1} parent=5 // pred_check_branch
        %235 = sbr.rel (%p232) target = $region12
      $region11: #{tpu_custom_call.1} parent=5 // pred_region
        %s236 = ssub.s32 %s20, 1
        // Predicated region
        $region13: #{tpu_custom_call.1} parent=11 // pred_check
          %p237 = pneg %p79
        $region14: #{tpu_custom_call.1} parent=11 // pred_check_branch
          %239 = sbr.rel (%p237) target = $region16
        $region15: #{tpu_custom_call.1} parent=11 // pred_region
          %s241 = ssub.s32 512, 512
          %242 = vsyncadd [#allocation7], %s241
          %s243 = sshll.u32 [#allocation6], 4
          %s244 = int_to_ptr.vmem [resolvable:$true] %s243
          %249 = dma.hbm_to_vmem [thread:$0]  %s1, 512, %s244, [#allocation7], 128, 128, 8
        $region16: #{tpu_custom_call.1} parent=11 // pred_fallthru
          _
        // Predicated region
        $region17: #{tpu_custom_call.1} parent=11 // pred_check
          %p250 = pneg %p100
        $region18: #{tpu_custom_call.1} parent=11 // pred_check_branch
          %252 = sbr.rel (%p250) target = $region20
        $region19: #{tpu_custom_call.1} parent=11 // pred_region
          _
        $region20: #{tpu_custom_call.1} parent=11 // pred_fallthru
          _
        // Predicated region
        $region21: #{tpu_custom_call.1} parent=11 // pred_check
          %p253 = pneg %p121
        $region22: #{tpu_custom_call.1} parent=11 // pred_check_branch
          %255 = sbr.rel (%p253) target = $region24
        $region23: #{tpu_custom_call.1} parent=11 // pred_region
          _
        $region24: #{tpu_custom_call.1} parent=11 // pred_fallthru
          _
        // Predicated region
        $region25: #{tpu_custom_call.1} parent=11 // pred_check
          %p256 = pneg %p142
        $region26: #{tpu_custom_call.1} parent=11 // pred_check_branch
          %258 = sbr.rel (%p256) target = $region28
        $region27: #{tpu_custom_call.1} parent=11 // pred_region
          _
        $region28: #{tpu_custom_call.1} parent=11 // pred_fallthru
          _
        // Predicated region
        $region29: #{tpu_custom_call.1} parent=11 // pred_check
          %p259 = pneg %p168
        $region30: #{tpu_custom_call.1} parent=11 // pred_check_branch
          %261 = sbr.rel (%p259) target = $region32
        $region31: #{tpu_custom_call.1} parent=11 // pred_region
          %s262 = smul.u32 2, %s30
          %s264 = ssub.s32 1024, 1024
          %265 = vsyncadd [#allocation7], %s264
          %s266 = smul.addr %s262, 128
          %s267 = scalar_lea.hbm %s5, %s266
          %s268 = sshll.u32 [#allocation8], 4
          %s269 = int_to_ptr.vmem [resolvable:$true] %s268
          %274 = dma.hbm_to_vmem [thread:$0]  %s267, 1024, %s269, [#allocation7], 256, 256, 16
        $region32: #{tpu_custom_call.1} parent=11 // pred_fallthru
          _
        // Predicated region
        $region33: #{tpu_custom_call.1} parent=11 // pred_check
          %p275 = pneg %p194
        $region34: #{tpu_custom_call.1} parent=11 // pred_check_branch
          %277 = sbr.rel (%p275) target = $region36
        $region35: #{tpu_custom_call.1} parent=11 // pred_region
          %s278 = smul.u32 2, %s30
          %p279 = scmp.lt.s32.totalorder %s278, 1
          %s280 = scalar_select %p279, %s278, 1
          %s281 = scalar_lea.vmem %s6, %s280
          %s282 = smul.u32 2, %s30
        $region36: #{tpu_custom_call.1} parent=11 // pred_fallthru
          _
      $region12: #{tpu_custom_call.1} parent=5 // pred_fallthru
        _
      %p283 = scmp.lt.s32.totalorder %s20, 2
      // Predicated region
      $region37: #{tpu_custom_call.1} parent=5 // pred_check
        %p284 = pneg %p283
      $region38: #{tpu_custom_call.1} parent=5 // pred_check_branch
        %286 = sbr.rel (%p284) target = $region40
      $region39: #{tpu_custom_call.1} parent=5 // pred_region
        // Predicated region
        $region41: #{tpu_custom_call.1} parent=39 // pred_check
          %p287 = pneg %p52
        $region42: #{tpu_custom_call.1} parent=39 // pred_check_branch
          %289 = sbr.rel (%p287) target = $region44
        $region43: #{tpu_custom_call.1} parent=39 // pred_region
          %s290 = sand.u32 %s42, 1
          %s291 = scalar_lea.sflag [#allocation4], %s290
          %s292 = sand.u32 %s42, 1
          %s293 = smul.addr %s292, 8
          %s294 = scalar_lea.vmem [#allocation3], %s293
          %s296 = ssub.s32 128, 128
          %297 = vsyncadd %s291, %s296
          %s298 = smul.addr %s27, 128
          %s299 = scalar_lea.hbm %s0, %s298
          %s301 = sshll.u32 %s294, 4
          %s302 = int_to_ptr.vmem [resolvable:$true] %s301
          %304 = dma.hbm_to_vmem [thread:$0]  %s299, 128, %s302, %s291
        $region44: #{tpu_custom_call.1} parent=39 // pred_fallthru
          _
      $region40: #{tpu_custom_call.1} parent=5 // pred_fallthru
        _
      %p305 = scmp.le.s32.totalorder 1, %s20
      %p306 = scmp.lt.s32.totalorder %s20, 3
      %p307 = pnand %p305, %p306
      %p308 = pneg %p307
      // Predicated region
      $region45: #{tpu_custom_call.1} parent=5 // pred_check
        _
      $region46: #{tpu_custom_call.1} parent=5 // pred_check_branch
        %310 = sbr.rel (%p307) target = $region48
      $region47: #{tpu_custom_call.1} parent=5 // pred_region
        %s311 = ssub.s32 %s20, 1
        %s312 = sand.u32 %s45, 1
        %s313 = scalar_lea.sflag [#allocation4], %s312
        %s314 = sand.u32 %s45, 1
        %s315 = smul.addr %s314, 8
        %s316 = scalar_lea.vmem [#allocation3], %s315
        // Predicated region
        $region49: #{tpu_custom_call.1} parent=47 // pred_check
          %p317 = pneg %p58
        $region50: #{tpu_custom_call.1} parent=47 // pred_check_branch
          %319 = sbr.rel (%p317) target = $region52
        $region51: #{tpu_custom_call.1} parent=47 // pred_region
          %320 = dma.done %s313, 128
        $region52: #{tpu_custom_call.1} parent=47 // pred_fallthru
          _
        // Predicated region
        $region53: #{tpu_custom_call.1} parent=47 // pred_check
          %p321 = pneg %p79
        $region54: #{tpu_custom_call.1} parent=47 // pred_check_branch
          %323 = sbr.rel (%p321) target = $region56
        $region55: #{tpu_custom_call.1} parent=47 // pred_region
          %324 = dma.done [#allocation7], 512
        $region56: #{tpu_custom_call.1} parent=47 // pred_fallthru
          _
        // Predicated region
        $region57: #{tpu_custom_call.1} parent=47 // pred_check
          %p325 = pneg %p168
        $region58: #{tpu_custom_call.1} parent=47 // pred_check_branch
          %327 = sbr.rel (%p325) target = $region60
        $region59: #{tpu_custom_call.1} parent=47 // pred_region
          %328 = dma.done [#allocation7], 1024
        $region60: #{tpu_custom_call.1} parent=47 // pred_fallthru
          _
        %s329 = sand.u32 %s45, 1
        %s330 = scalar_lea.sflag [#allocation4], %s329
        %s331 = sand.u32 %s45, 1
        %s332 = smul.addr %s331, 8
        %s333 = scalar_lea.vmem [#allocation3], %s332
        %p334 = pneg %p58
        %p335 = pneg %p55
        %p336 = pneg %p79
        %p337 = pneg %p76
        %p338 = pneg %p100
        %p339 = pneg %p97
        %p340 = pneg %p121
        %p341 = pneg %p118
        %p342 = pneg %p142
        %p343 = pneg %p139
        %p344 = pneg %p168
        %p345 = pneg %p165
        %s346 = smul.u32 2, %s30
        %p347 = scmp.lt.s32.totalorder %s346, 1
        %s348 = scalar_select %p347, %s346, 1
        %s349 = scalar_lea.vmem %s6, %s348
        %p350 = pneg %p194
        %p351 = pneg %p191
        %p352 = pneg %p222
        %p353 = pneg %p219
        %s354 = sand.u32 %s209, 1
        %s355 = scalar_lea.sflag [#allocation5], %s354
        %s356 = sand.u32 %s209, 1
        %s357 = smul.addr %s356, 16
        %s358 = scalar_lea.vmem [#allocation9], %s357
        %s359 = smul.u32 2, %s30
        %s360 = smul.u32 2, %s30
        %p361 = scmp.lt.s32.totalorder %s360, 1
        %s362 = scalar_select %p361, %s360, 1
        %s363 = scalar_lea.vmem %s6, %s362
        %s364 = smul.u32 2, %s30
        %s365 = smul.u32 2, %s30
        %p366 = scmp.eq.s32.totalorder %s30, 0
        // Predicated region
        $region61: #{tpu_custom_call.1} parent=47 // pred_check
          %p367 = pneg %p366
        $region62: #{tpu_custom_call.1} parent=47 // pred_check_branch
          %369 = sbr.rel (%p367) target = $region64
        $region63: #{tpu_custom_call.1} parent=47 // pred_region
          %v370 = vld [vmem:[%s316] sm:$0xff]
          %v371 = vld [vmem:[#allocation6] sm:$0xff]
          %v372 = vld [vmem:[#allocation6 + $0x8] sm:$0xff]
          %v373 = vld [vmem:[#allocation6 + $0x10] sm:$0xff]
          %v374 = vld [vmem:[#allocation6 + $0x18] sm:$0xff]
          %v375 = vld [vmem:[%s2] sm:$0x1]
          %v377 = vlaneseq
          %v378 = vshrl.u32 %v377, 7
          %v379 = vsub.s32 0, %v378
          %v380 = vrot.slane %v375, %v379
          %vm382 = vcmask 261120
          %v384 = vsel %vm382, %v370, 0
          %386 = vmatprep.subr.mxu0 0.0
          %387 = vmatpush1.msra.mxu0 0.0
          %388 = vmatprep.subr.mxu0 0.0
          %389 = vmatpush1.msra.mxu0 0.0
          %390 = vmatprep.subr.mxu0 0.0
          %391 = vmatpush1.msra.mxu0 0.0
          %392 = vmatprep.subr.mxu0 0.0
          %393 = vmatpush1.msra.mxu0 0.0
          %394 = vmatprep.subr.mxu0 0.0
          %395 = vmatpush1.msra.mxu0 0.0
          %396 = vmatprep.subr.mxu0 0.0
          %397 = vmatpush1.msra.mxu0 0.0
          %398 = vmatprep.subr.mxu0 0.0
          %399 = vmatpush1.msra.mxu0 0.0
          %400 = vmatprep.subr.mxu0 0.0
          %401 = vmatpush1.msra.mxu0 0.0
          %402 = vmatprep.subr.mxu0 0.0
          %403 = vmatpush1.msra.mxu0 0.0
          %404 = vmatprep.subr.mxu0 0.0
          %405 = vmatpush1.msra.mxu0 0.0
          %406 = vmatprep.subr.mxu0 0.0
          %407 = vmatpush1.msra.mxu0 0.0
          %408 = vmatprep.subr.mxu0 0.0
          %409 = vmatpush1.msra.mxu0 0.0
          %410 = vmatprep.subr.mxu0 0.0
          %411 = vmatpush1.msra.mxu0 %v374
          %412 = vmatprep.subr.mxu0 0.0
          %413 = vmatpush1.msra.mxu0 %v373
          %414 = vmatprep.subr.mxu0 0.0
          %415 = vmatpush1.msra.mxu0 %v372
          %416 = vmatprep.subr.mxu0 0.0
          %417 = vmatpush1.msra.mxu0 %v371
          %418 = vmatprep.subr.mxu0 0.0
          %419 = vmatpush2.msra.mxu0 0.0
          %420 = vmatprep.subr.mxu0 0.0
          %421 = vmatpush2.msra.mxu0 0.0
          %422 = vmatprep.subr.mxu0 0.0
          %423 = vmatpush2.msra.mxu0 0.0
          %424 = vmatprep.subr.mxu0 0.0
          %425 = vmatpush2.msra.mxu0 0.0
          %426 = vmatprep.subr.mxu0 0.0
          %427 = vmatpush2.msra.mxu0 0.0
          %428 = vmatprep.subr.mxu0 0.0
          %429 = vmatpush2.msra.mxu0 0.0
          %430 = vmatprep.subr.mxu0 0.0
          %431 = vmatpush2.msra.mxu0 0.0
          %432 = vmatprep.subr.mxu0 0.0
          %433 = vmatpush2.msra.mxu0 0.0
          %434 = vmatprep.subr.mxu0 0.0
          %435 = vmatpush2.msra.mxu0 0.0
          %436 = vmatprep.subr.mxu0 0.0
          %437 = vmatpush2.msra.mxu0 0.0
          %438 = vmatprep.subr.mxu0 0.0
          %439 = vmatpush2.msra.mxu0 0.0
          %440 = vmatprep.subr.mxu0 0.0
          %441 = vmatpush2.msra.mxu0 0.0
          %442 = vmatprep.subr.mxu0 0.0
          %443 = vmatpush2.msra.mxu0 0.0
          %444 = vmatprep.subr.mxu0 0.0
          %445 = vmatpush2.msra.mxu0 0.0
          %446 = vmatprep.subr.mxu0 0.0
          %447 = vmatpush2.msra.mxu0 0.0
          %448 = vmatprep.subr.mxu0 0.0
          %449 = vmatpush2.msra.mxu0 0.0
          %450 = vmatprep.mubr.f32.mxu0 0.0
          %451 = vmatmul.mubr.f32.gmra.mxu0 %v384
          %v452 = vpop.f32.mrf.mxu0
          %v453 = vadd.f32 %v380, %v452
          %v454 = vpop.f32.mrf.mxu0
          %455 = vdwg.mxu0
          %v456 = vmul.f32 %v453, 0.5
          %v457 = vmul.f32 %v453, 0.70710677
          %v458 = vand.u32 2147483647, %v457
          %v459 = vmul.f32 %v458, 0.3275911
          %v460 = vadd.f32 %v459, 1.0
          %v461 = vrcp.pop %v460
          %v462 = vmul.f32 1.0, %v461
          %v463 = vmul.f32 %v462, 1.0614054
          %v464 = vadd.f32 %v463, -1.4531521
          %v465 = vmul.f32 %v464, %v462
          %v466 = vadd.f32 %v465, 1.4214138
          %v467 = vmul.f32 %v466, %v462
          %v468 = vadd.f32 %v467, -0.28449672
          %v469 = vmul.f32 %v468, %v462
          %v470 = vadd.f32 %v469, 0.2548296
          %v471 = vmul.f32 %v470, %v462
          %v472 = vsub.f32 0.0, %v458
          %v473 = vmul.f32 %v472, %v458
          %v474 = vmul.f32 %v473, 1.442695
          %v475 = vpow.pop %v474
          %v476 = vmul.f32 %v471, %v475
          %v477 = vsub.f32 1.0, %v476
          %vm478 = vcmp.ge.f32.partialorder %v457, 0.0
          %v479 = vsub.f32 0.0, %v477
          %v480 = vsel %vm478, %v477, %v479
          %v481 = vadd.f32 %v480, 1.0
          %v482 = vmul.f32 %v456, %v481
          %v483 = vsel %vm382, %v482, 0.0
          %484 = vadd.xlane.f32.xlu0 %v483
          %v485 = vpop.xlane.xlu0 %484
          %v486 = vrcp.pop 32.0
          %v487 = vmul.f32 %v485, %v486
          %v488 = vsub.f32 %v482, %v487
          %v489 = vmul.f32 %v488, %v488
          %v490 = vsel %vm382, %v489, 0.0
          %491 = vadd.xlane.f32.xlu0 %v490
          %v492 = vpop.xlane.xlu0 %491
          %v493 = vmul.f32 %v492, %v486
          %v494 = vadd.f32 %v493, 1e-12
          %v495 = vrsqrt.pop %v494
          %v496 = vmul.f32 %v488, %v495
          %v497 = vld [vmem:[%s3] sm:$0x1]
          %v499 = vlaneseq
          %v500 = vshrl.u32 %v499, 7
          %v501 = vsub.s32 0, %v500
          %v502 = vrot.slane %v497, %v501
          %v504 = vmul.f32 %v496, %v502
          %v505 = vld [vmem:[%s4] sm:$0x1]
          %v507 = vlaneseq
          %v508 = vshrl.u32 %v507, 7
          %v509 = vsub.s32 0, %v508
          %v510 = vrot.slane %v505, %v509
          %v512 = vadd.f32 %v504, %v510
          %513 = vst.msk [vmem:[#allocation2] sm:$0xff] %vm382, %v512
        $region64: #{tpu_custom_call.1} parent=47 // pred_fallthru
          _
        %v514 = vld [vmem:[#allocation2] sm:$0xff]
        %v515 = vld [vmem:[#allocation8] sm:$0xff]
        %v516 = vld [vmem:[#allocation8 + $0x8] sm:$0xff]
        %v517 = vld [vmem:[#allocation8 + $0x10] sm:$0xff]
        %v518 = vld [vmem:[#allocation8 + $0x18] sm:$0xff]
        %v519 = vld [vmem:[#allocation8 + $0x20] sm:$0xff]
        %v520 = vld [vmem:[#allocation8 + $0x28] sm:$0xff]
        %v521 = vld [vmem:[#allocation8 + $0x30] sm:$0xff]
        %v522 = vld [vmem:[#allocation8 + $0x38] sm:$0xff]
        %v523 = vld [vmem:[%s363] sm:$0x3]
        %v525 = vlaneseq
        %v526 = vshrl.u32 %v525, 7
        %v527 = vsub.s32 0, %v526
        %v528 = vrot.slane %v523, %v527
        %v529 = vlaneseq
        %v530 = vshrl.u32 %v529, 7
        %v531 = vsub.s32 1, %v530
        %v532 = vrot.slane %v523, %v531
        %vm535 = vcmask 261120
        %v537 = vsel %vm535, %v514, 0
        %539 = vmatprep.subr.mxu0 0.0
        %540 = vmatpush1.msra.mxu0 0.0
        %541 = vmatprep.subr.mxu0 0.0
        %542 = vmatpush1.msra.mxu0 0.0
        %543 = vmatprep.subr.mxu0 0.0
        %544 = vmatpush1.msra.mxu0 0.0
        %545 = vmatprep.subr.mxu0 0.0
        %546 = vmatpush1.msra.mxu0 0.0
        %547 = vmatprep.subr.mxu0 0.0
        %548 = vmatpush1.msra.mxu0 0.0
        %549 = vmatprep.subr.mxu0 0.0
        %550 = vmatpush1.msra.mxu0 0.0
        %551 = vmatprep.subr.mxu0 0.0
        %552 = vmatpush1.msra.mxu0 0.0
        %553 = vmatprep.subr.mxu0 0.0
        %554 = vmatpush1.msra.mxu0 0.0
        %555 = vmatprep.subr.mxu0 0.0
        %556 = vmatpush1.msra.mxu0 0.0
        %557 = vmatprep.subr.mxu0 0.0
        %558 = vmatpush1.msra.mxu0 0.0
        %559 = vmatprep.subr.mxu0 0.0
        %560 = vmatpush1.msra.mxu0 0.0
        %561 = vmatprep.subr.mxu0 0.0
        %562 = vmatpush1.msra.mxu0 0.0
        %563 = vmatprep.subr.mxu0 %v522
        %564 = vmatpush1.msra.mxu0 %v521
        %565 = vmatprep.subr.mxu0 %v520
        %566 = vmatpush1.msra.mxu0 %v519
        %567 = vmatprep.subr.mxu0 %v518
        %568 = vmatpush1.msra.mxu0 %v517
        %569 = vmatprep.subr.mxu0 %v516
        %570 = vmatpush1.msra.mxu0 %v515
        %571 = vmatprep.subr.mxu0 0.0
        %572 = vmatpush2.msra.mxu0 0.0
        %573 = vmatprep.subr.mxu0 0.0
        %574 = vmatpush2.msra.mxu0 0.0
        %575 = vmatprep.subr.mxu0 0.0
        %576 = vmatpush2.msra.mxu0 0.0
        %577 = vmatprep.subr.mxu0 0.0
        %578 = vmatpush2.msra.mxu0 0.0
        %579 = vmatprep.subr.mxu0 0.0
        %580 = vmatpush2.msra.mxu0 0.0
        %581 = vmatprep.subr.mxu0 0.0
        %582 = vmatpush2.msra.mxu0 0.0
        %583 = vmatprep.subr.mxu0 0.0
        %584 = vmatpush2.msra.mxu0 0.0
        %585 = vmatprep.subr.mxu0 0.0
        %586 = vmatpush2.msra.mxu0 0.0
        %587 = vmatprep.subr.mxu0 0.0
        %588 = vmatpush2.msra.mxu0 0.0
        %589 = vmatprep.subr.mxu0 0.0
        %590 = vmatpush2.msra.mxu0 0.0
        %591 = vmatprep.subr.mxu0 0.0
        %592 = vmatpush2.msra.mxu0 0.0
        %593 = vmatprep.subr.mxu0 0.0
        %594 = vmatpush2.msra.mxu0 0.0
        %595 = vmatprep.subr.mxu0 0.0
        %596 = vmatpush2.msra.mxu0 0.0
        %597 = vmatprep.subr.mxu0 0.0
        %598 = vmatpush2.msra.mxu0 0.0
        %599 = vmatprep.subr.mxu0 0.0
        %600 = vmatpush2.msra.mxu0 0.0
        %601 = vmatprep.subr.mxu0 0.0
        %602 = vmatpush2.msra.mxu0 0.0
        %603 = vmatprep.mubr.f32.mxu0 0.0
        %604 = vmatmul.mubr.f32.gmra.mxu0 %v537
        %v605 = vpop.f32.mrf.mxu0
        %v606 = vadd.f32 %v528, %v605
        %v607 = vpop.f32.mrf.mxu0
        %v608 = vadd.f32 %v532, %v607
        %609 = vdwg.mxu0
        %610 = vst [vmem:[%s358] sm:$0xff] %v606
        %611 = vst [vmem:[%s358 + $0x8] sm:$0xff] %v608
        %s612 = sand.u32 %s209, 1
        %s613 = scalar_lea.sflag [#allocation5], %s612
        %s614 = sand.u32 %s209, 1
        %s615 = smul.addr %s614, 16
        %s616 = scalar_lea.vmem [#allocation9], %s615
        // Predicated region
        $region65: #{tpu_custom_call.1} parent=47 // pred_check
          %p617 = pneg %p219
        $region66: #{tpu_custom_call.1} parent=47 // pred_check_branch
          %619 = sbr.rel (%p617) target = $region68
        $region67: #{tpu_custom_call.1} parent=47 // pred_region
          %s620 = smul.u32 2, %s30
          %s622 = ssub.s32 256, 256
          %623 = vsyncadd %s613, %s622
          %s624 = smul.addr %s29, 2
          %s625 = sadd.s32 %s620, %s624
          %s626 = smul.addr %s625, 128
          %s627 = scalar_lea.hbm %s7, %s626
          %s629 = sshll.u32 %s616, 4
          %s630 = int_to_ptr.vmem [resolvable:$true] %s629
          %632 = dma.vmem_to_hbm [thread:$0]  %s630, 256, %s627, %s613
        $region68: #{tpu_custom_call.1} parent=47 // pred_fallthru
          _
      $region48: #{tpu_custom_call.1} parent=5 // pred_fallthru
        _
      %p633 = scmp.le.s32.totalorder 2, %s20
      // Predicated region
      $region69: #{tpu_custom_call.1} parent=5 // pred_check
        %p634 = pneg %p633
      $region70: #{tpu_custom_call.1} parent=5 // pred_check_branch
        %636 = sbr.rel (%p634) target = $region72
      $region71: #{tpu_custom_call.1} parent=5 // pred_region
        %s637 = ssub.s32 %s20, 2
        // Predicated region
        $region73: #{tpu_custom_call.1} parent=71 // pred_check
          %p638 = pneg %p225
        $region74: #{tpu_custom_call.1} parent=71 // pred_check_branch
          %640 = sbr.rel (%p638) target = $region76
        $region75: #{tpu_custom_call.1} parent=71 // pred_region
          %s641 = sand.u32 %s210, 1
          %s642 = scalar_lea.sflag [#allocation5], %s641
          %s643 = sand.u32 %s210, 1
          %s644 = smul.addr %s643, 16
          %s645 = scalar_lea.vmem [#allocation9], %s644
          %646 = dma.done %s642, 256
        $region76: #{tpu_custom_call.1} parent=71 // pred_fallthru
          _
      $region72: #{tpu_custom_call.1} parent=5 // pred_fallthru
        _
    $region6: #{tpu_custom_call.1} parent=1 // loop_footer
      %s24 = sadd.s32 1, %s20
    $region7: #{tpu_custom_call.1} parent=1 // loop_footer_branch
      %19 = sbr.rel target = $region3
    $region8: #{tpu_custom_call.1} parent=1 // loop_exit
      _
    %647 = vsyncpa [#allocation4], 1
    %s648 = scalar_lea.sflag [#allocation4], 1
    %649 = vsyncpa %s648, 1
    %650 = vsyncpa [#allocation7], 1
    %651 = vsyncpa [#allocation5], 1
    %s652 = scalar_lea.sflag [#allocation5], 1
    %653 = vsyncpa %s652, 1

// kernel: tpu_custom_call.1
$region0: #{tpu_custom_call.1}
  #allocation0 [shape = 'u32[]', space=smem, size = 0x4, offset = 0x4, fixed_abs, tag = 'smem constant byte address 0x4 - core index']
  #allocation1 [shape = 'u32[144,128]{1,0:T(1,128)}', space=vmem, size = 0x12000, scoped, tag = 'internal scratch']
  #allocation2 [shape = 'f32[8,32]{1,0:T(8,128)}', space=vmem, size = 0x1000, scoped, tag = 'scratch operand']
  %s0 = inlined_call_operand.hbm [shape: f32[16,32], index: 0, kind: input, shape index: {}]
  %s1 = inlined_call_operand.hbm [shape: f32[32,32], index: 1, kind: input, shape index: {}]
  %s2 = inlined_call_operand.vmem [shape: f32[1,32], index: 2, kind: input, shape index: {}]
  %s3 = inlined_call_operand.vmem [shape: f32[1,32], index: 3, kind: input, shape index: {}]
  %s4 = inlined_call_operand.vmem [shape: f32[1,32], index: 4, kind: input, shape index: {}]
  %s5 = inlined_call_operand.hbm [shape: f32[32,256], index: 5, kind: input, shape index: {}]
  %s6 = inlined_call_operand.vmem [shape: f32[1,256], index: 6, kind: input, shape index: {}]
  %s7 = inlined_call_operand.hbm [shape: f32[16,256], index: 7, kind: output, shape index: {}]
  %s8 = sld [smem:[#allocation0]]
  $region77: #{tpu_custom_call.1} parent=0
    _
  %s10 = ssub.s32 1, %s8
  %s11 = scalar_select 0, %s10, %s8
  $region1: #{tpu_custom_call.1} parent=0
    #allocation3 [shape = 'u8[8192]{0}', space=vmem, size = 0x2000, scoped, tag = 'input window, operand 0']
    #allocation4 [shape = 's32[2]{0}', space=sflag, size = 0x8, scoped, tag = 'scoped memory for tpu_custom_call.1']
    #allocation5 [shape = 's32[2]{0}', space=sflag, size = 0x8, scoped, tag = 'scoped memory for tpu_custom_call.1']
    #allocation6 [shape = 'u8[16384]{0}', space=vmem, size = 0x4000, scoped, tag = 'input window, operand 1, single buffered']
    #allocation7 [shape = 's32[1]{0}', space=sflag, size = 0x4, scoped, tag = 'scoped memory for tpu_custom_call.1']
    #allocation8 [shape = 'u8[32768]{0}', space=vmem, size = 0x8000, scoped, tag = 'input window, operand 5, single buffered']
    #allocation9 [shape = 'u8[16384]{0}', space=vmem, size = 0x4000, scoped, tag = 'output window, operand 0']
    %12 = vsyncpa [#allocation4], 0
    %s13 = scalar_lea.sflag [#allocation4], 1
    %14 = vsyncpa %s13, 0
    %15 = vsyncpa [#allocation7], 0
    %16 = vsyncpa [#allocation5], 0
    %s17 = scalar_lea.sflag [#allocation5], 1
    %18 = vsyncpa %s17, 0
    loop: start=0, step=1, limit=4
    $region2: #{tpu_custom_call.1} parent=1 // loop_pre_header
      _
    $region3: #{tpu_custom_call.1} parent=1 // loop_header
      %s20 = sphi 0, %s24
      %p21 = scmp.ge.s32.totalorder %s20, 4
      %s27 = sphi 0, %s39
      %s28 = sphi 0, %s35
      %s29 = sphi 0, %s27
      %s30 = sphi 0, %s28
      %s31 = sphi 0, %s29
      %s32 = sphi 0, %s30
      %s42 = sphi 0, %s44
      %s45 = sphi 0, %s42
      %s46 = sphi 0, %s45
      %s62 = sphi 0, %s46
      %s66 = sphi 0, %s66
      %s68 = sphi 0, %s66
      %s69 = sphi 0, %s68
      %s83 = sphi 0, %s69
      %s87 = sphi 0, %s87
      %s89 = sphi 0, %s87
      %s90 = sphi 0, %s89
      %s104 = sphi 0, %s90
      %s108 = sphi 0, %s108
      %s110 = sphi 0, %s108
      %s111 = sphi 0, %s110
      %s125 = sphi 0, %s111
      %s129 = sphi 0, %s129
      %s131 = sphi 0, %s129
      %s132 = sphi 0, %s131
      %s146 = sphi 0, %s132
      %s152 = sphi 0, %s154
      %s155 = sphi 0, %s152
      %s156 = sphi 0, %s155
      %s172 = sphi 0, %s156
      %s178 = sphi 0, %s180
      %s181 = sphi 0, %s178
      %s182 = sphi 0, %s181
      %s198 = sphi 0, %s182
      %s206 = sphi 0, %s208
      %s209 = sphi 0, %s206
      %s210 = sphi 0, %s209
      %s226 = sphi 0, %s210
    $region4: #{tpu_custom_call.1} parent=1 // loop_header_branch
      %23 = sbr.rel (%p21) target = $region8
    $region5: #{tpu_custom_call.1} parent=1 // loop_body
      %s25 = ssub.s32 %s20, 1
      %s26 = ssub.s32 %s20, 2
      %s33 = sadd.s32 1, %s28
      %p34 = scmp.ge.s32.totalorder %s33, 1
      %s35 = scalar_select %p34, 0, %s33
      %s36 = sadd.s32 1, %s27
      %s37 = scalar_select %p34, %s36, %s27
      %p38 = scmp.ge.s32.totalorder %s37, 2
      %s39 = scalar_select %p38, 0, %s37
      %s40 = ssub.s32 %s27, %s39
      %p41 = scmp.eq.s32.totalorder %s40, 0
      %s43 = sadd.s32 %s42, 1
      %s44 = scalar_select %p41, %s42, %s43
      %p47 = pneg %p41
      %p48 = scmp.eq.s32.totalorder %s20, 1
      %p49 = por %p47, %p48
      %p50 = scmp.ne.s32.totalorder %s42, %s45
      %p51 = scmp.eq.s32.totalorder %s20, 0
      %p52 = por %p50, %p51
      %p53 = scmp.ne.s32.totalorder %s42, %s45
      %p54 = scmp.eq.s32.totalorder %s25, 1
      %p55 = por %p53, %p54
      %p56 = scmp.ne.s32.totalorder %s45, %s46
      %p57 = scmp.eq.s32.totalorder %s25, 0
      %p58 = por %p56, %p57
      %p59 = scmp.ne.s32.totalorder %s45, %s46
      %p60 = scmp.eq.s32.totalorder %s26, 1
      %p61 = por %p59, %p60
      %p63 = scmp.ne.s32.totalorder %s46, %s62
      %p64 = scmp.eq.s32.totalorder %s26, 0
      %p65 = por %p63, %p64
      %s67 = sadd.s32 %s66, 1
      %p70 = scmp.eq.s32.totalorder %s20, 1
      %p71 = scmp.ne.s32.totalorder %s66, %s68
      %p72 = scmp.eq.s32.totalorder %s20, 0
      %p73 = por %p71, %p72
      %p74 = scmp.ne.s32.totalorder %s66, %s68
      %p75 = scmp.eq.s32.totalorder %s25, 1
      %p76 = por %p74, %p75
      %p77 = scmp.ne.s32.totalorder %s68, %s69
      %p78 = scmp.eq.s32.totalorder %s25, 0
      %p79 = por %p77, %p78
      %p80 = scmp.ne.s32.totalorder %s68, %s69
      %p81 = scmp.eq.s32.totalorder %s26, 1
      %p82 = por %p80, %p81
      %p84 = scmp.ne.s32.totalorder %s69, %s83
      %p85 = scmp.eq.s32.totalorder %s26, 0
      %p86 = por %p84, %p85
      %s88 = sadd.s32 %s87, 1
      %p91 = scmp.eq.s32.totalorder %s20, 1
      %p92 = scmp.ne.s32.totalorder %s87, %s89
      %p93 = scmp.eq.s32.totalorder %s20, 0
      %p94 = por %p92, %p93
      %p95 = scmp.ne.s32.totalorder %s87, %s89
      %p96 = scmp.eq.s32.totalorder %s25, 1
      %p97 = por %p95, %p96
      %p98 = scmp.ne.s32.totalorder %s89, %s90
      %p99 = scmp.eq.s32.totalorder %s25, 0
      %p100 = por %p98, %p99
      %p101 = scmp.ne.s32.totalorder %s89, %s90
      %p102 = scmp.eq.s32.totalorder %s26, 1
      %p103 = por %p101, %p102
      %p105 = scmp.ne.s32.totalorder %s90, %s104
      %p106 = scmp.eq.s32.totalorder %s26, 0
      %p107 = por %p105, %p106
      %s109 = sadd.s32 %s108, 1
      %p112 = scmp.eq.s32.totalorder %s20, 1
      %p113 = scmp.ne.s32.totalorder %s108, %s110
      %p114 = scmp.eq.s32.totalorder %s20, 0
      %p115 = por %p113, %p114
      %p116 = scmp.ne.s32.totalorder %s108, %s110
      %p117 = scmp.eq.s32.totalorder %s25, 1
      %p118 = por %p116, %p117
      %p119 = scmp.ne.s32.totalorder %s110, %s111
      %p120 = scmp.eq.s32.totalorder %s25, 0
      %p121 = por %p119, %p120
      %p122 = scmp.ne.s32.totalorder %s110, %s111
      %p123 = scmp.eq.s32.totalorder %s26, 1
      %p124 = por %p122, %p123
      %p126 = scmp.ne.s32.totalorder %s111, %s125
      %p127 = scmp.eq.s32.totalorder %s26, 0
      %p128 = por %p126, %p127
      %s130 = sadd.s32 %s129, 1
      %p133 = scmp.eq.s32.totalorder %s20, 1
      %p134 = scmp.ne.s32.totalorder %s129, %s131
      %p135 = scmp.eq.s32.totalorder %s20, 0
      %p136 = por %p134, %p135
      %p137 = scmp.ne.s32.totalorder %s129, %s131
      %p138 = scmp.eq.s32.totalorder %s25, 1
      %p139 = por %p137, %p138
      %p140 = scmp.ne.s32.totalorder %s131, %s132
      %p141 = scmp.eq.s32.totalorder %s25, 0
      %p142 = por %p140, %p141
      %p143 = scmp.ne.s32.totalorder %s131, %s132
      %p144 = scmp.eq.s32.totalorder %s26, 1
      %p145 = por %p143, %p144
      %p147 = scmp.ne.s32.totalorder %s132, %s146
      %p148 = scmp.eq.s32.totalorder %s26, 0
      %p149 = por %p147, %p148
      %s150 = ssub.s32 %s28, %s35
      %p151 = scmp.eq.s32.totalorder %s150, 0
      %s153 = sadd.s32 %s152, 1
      %s154 = scalar_select %p151, %s152, %s153
      %p157 = pneg %p151
      %p158 = scmp.eq.s32.totalorder %s20, 1
      %p159 = por %p157, %p158
      %p160 = scmp.ne.s32.totalorder %s152, %s155
      %p161 = scmp.eq.s32.totalorder %s20, 0
      %p162 = por %p160, %p161
      %p163 = scmp.ne.s32.totalorder %s152, %s155
      %p164 = scmp.eq.s32.totalorder %s25, 1
      %p165 = por %p163, %p164
      %p166 = scmp.ne.s32.totalorder %s155, %s156
      %p167 = scmp.eq.s32.totalorder %s25, 0
      %p168 = por %p166, %p167
      %p169 = scmp.ne.s32.totalorder %s155, %s156
      %p170 = scmp.eq.s32.totalorder %s26, 1
      %p171 = por %p169, %p170
      %p173 = scmp.ne.s32.totalorder %s156, %s172
      %p174 = scmp.eq.s32.totalorder %s26, 0
      %p175 = por %p173, %p174
      %s176 = ssub.s32 %s28, %s35
      %p177 = scmp.eq.s32.totalorder %s176, 0
      %s179 = sadd.s32 %s178, 1
      %s180 = scalar_select %p177, %s178, %s179
      %p183 = pneg %p177
      %p184 = scmp.eq.s32.totalorder %s20, 1
      %p185 = por %p183, %p184
      %p186 = scmp.ne.s32.totalorder %s178, %s181
      %p187 = scmp.eq.s32.totalorder %s20, 0
      %p188 = por %p186, %p187
      %p189 = scmp.ne.s32.totalorder %s178, %s181
      %p190 = scmp.eq.s32.totalorder %s25, 1
      %p191 = por %p189, %p190
      %p192 = scmp.ne.s32.totalorder %s181, %s182
      %p193 = scmp.eq.s32.totalorder %s25, 0
      %p194 = por %p192, %p193
      %p195 = scmp.ne.s32.totalorder %s181, %s182
      %p196 = scmp.eq.s32.totalorder %s26, 1
      %p197 = por %p195, %p196
      %p199 = scmp.ne.s32.totalorder %s182, %s198
      %p200 = scmp.eq.s32.totalorder %s26, 0
      %p201 = por %p199, %p200
      %s202 = ssub.s32 %s27, %s39
      %s203 = ssub.s32 %s28, %s35
      %s204 = sor.u32 %s202, %s203
      %p205 = scmp.eq.s32.totalorder %s204, 0
      %s207 = sadd.s32 %s206, 1
      %s208 = scalar_select %p205, %s206, %s207
      %p211 = pneg %p205
      %p212 = scmp.eq.s32.totalorder %s20, 1
      %p213 = por %p211, %p212
      %p214 = scmp.ne.s32.totalorder %s206, %s209
      %p215 = scmp.eq.s32.totalorder %s20, 0
      %p216 = por %p214, %p215
      %p217 = scmp.ne.s32.totalorder %s206, %s209
      %p218 = scmp.eq.s32.totalorder %s25, 1
      %p219 = por %p217, %p218
      %p220 = scmp.ne.s32.totalorder %s209, %s210
      %p221 = scmp.eq.s32.totalorder %s25, 0
      %p222 = por %p220, %p221
      %p223 = scmp.ne.s32.totalorder %s209, %s210
      %p224 = scmp.eq.s32.totalorder %s26, 1
      %p225 = por %p223, %p224
      %p227 = scmp.ne.s32.totalorder %s210, %s226
      %p228 = scmp.eq.s32.totalorder %s26, 0
      %p229 = por %p227, %p228
      %p230 = scmp.le.s32.totalorder 1, %s20
      %p231 = scmp.lt.s32.totalorder %s20, 3
      %p232 = pnand %p230, %p231
      %p233 = pneg %p232
      // Predicated region
      $region9: #{tpu_custom_call.1} parent=5 // pred_check
        _
      $region10: #{tpu_custom_call.1} parent=5 // pred_check_branch
        %235 = sbr.rel (%p232) target = $region12
      $region11: #{tpu_custom_call.1} parent=5 // pred_region
        %s236 = ssub.s32 %s20, 1
        // Predicated region
        $region13: #{tpu_custom_call.1} parent=11 // pred_check
          %p237 = pneg %p79
        $region14: #{tpu_custom_call.1} parent=11 // pred_check_branch
          %239 = sbr.rel (%p237) target = $region16
        $region15: #{tpu_custom_call.1} parent=11 // pred_region
          %s241 = ssub.s32 512, 512
          %242 = vsyncadd [#allocation7], %s241
          %s243 = sshll.u32 [#allocation6], 4
          %s244 = int_to_ptr.vmem [resolvable:$true] %s243
          %249 = dma.hbm_to_vmem [thread:$0]  %s1, 512, %s244, [#allocation7], 128, 128, 8
        $region16: #{tpu_custom_call.1} parent=11 // pred_fallthru
          _
        // Predicated region
        $region17: #{tpu_custom_call.1} parent=11 // pred_check
          %p250 = pneg %p100
        $region18: #{tpu_custom_call.1} parent=11 // pred_check_branch
          %252 = sbr.rel (%p250) target = $region20
        $region19: #{tpu_custom_call.1} parent=11 // pred_region
          _
        $region20: #{tpu_custom_call.1} parent=11 // pred_fallthru
          _
        // Predicated region
        $region21: #{tpu_custom_call.1} parent=11 // pred_check
          %p253 = pneg %p121
        $region22: #{tpu_custom_call.1} parent=11 // pred_check_branch
          %255 = sbr.rel (%p253) target = $region24
        $region23: #{tpu_custom_call.1} parent=11 // pred_region
          _
        $region24: #{tpu_custom_call.1} parent=11 // pred_fallthru
          _
        // Predicated region
        $region25: #{tpu_custom_call.1} parent=11 // pred_check
          %p256 = pneg %p142
        $region26: #{tpu_custom_call.1} parent=11 // pred_check_branch
          %258 = sbr.rel (%p256) target = $region28
        $region27: #{tpu_custom_call.1} parent=11 // pred_region
          _
        $region28: #{tpu_custom_call.1} parent=11 // pred_fallthru
          _
        // Predicated region
        $region29: #{tpu_custom_call.1} parent=11 // pred_check
          %p259 = pneg %p168
        $region30: #{tpu_custom_call.1} parent=11 // pred_check_branch
          %261 = sbr.rel (%p259) target = $region32
        $region31: #{tpu_custom_call.1} parent=11 // pred_region
          %s262 = smul.u32 2, %s30
          %s264 = ssub.s32 1024, 1024
          %265 = vsyncadd [#allocation7], %s264
          %s266 = smul.addr %s262, 128
          %s267 = scalar_lea.hbm %s5, %s266
          %s268 = sshll.u32 [#allocation8], 4
          %s269 = int_to_ptr.vmem [resolvable:$true] %s268
          %274 = dma.hbm_to_vmem [thread:$0]  %s267, 1024, %s269, [#allocation7], 256, 256, 16
        $region32: #{tpu_custom_call.1} parent=11 // pred_fallthru
          _
        // Predicated region
        $region33: #{tpu_custom_call.1} parent=11 // pred_check
          %p275 = pneg %p194
        $region34: #{tpu_custom_call.1} parent=11 // pred_check_branch
          %277 = sbr.rel (%p275) target = $region36
        $region35: #{tpu_custom_call.1} parent=11 // pred_region
          %s278 = smul.u32 2, %s30
          %p279 = scmp.lt.s32.totalorder %s278, 1
          %s280 = scalar_select %p279, %s278, 1
          %s281 = scalar_lea.vmem %s6, %s280
          %s282 = smul.u32 2, %s30
        $region36: #{tpu_custom_call.1} parent=11 // pred_fallthru
          _
      $region12: #{tpu_custom_call.1} parent=5 // pred_fallthru
        _
      %p283 = scmp.lt.s32.totalorder %s20, 2
      // Predicated region
      $region37: #{tpu_custom_call.1} parent=5 // pred_check
        %p284 = pneg %p283
      $region38: #{tpu_custom_call.1} parent=5 // pred_check_branch
        %286 = sbr.rel (%p284) target = $region40
      $region39: #{tpu_custom_call.1} parent=5 // pred_region
        // Predicated region
        $region41: #{tpu_custom_call.1} parent=39 // pred_check
          %p287 = pneg %p52
        $region42: #{tpu_custom_call.1} parent=39 // pred_check_branch
          %289 = sbr.rel (%p287) target = $region44
        $region43: #{tpu_custom_call.1} parent=39 // pred_region
          %s290 = sand.u32 %s42, 1
          %s291 = scalar_lea.sflag [#allocation4], %s290
          %s292 = sand.u32 %s42, 1
          %s293 = smul.addr %s292, 8
          %s294 = scalar_lea.vmem [#allocation3], %s293
          %s296 = ssub.s32 128, 128
          %297 = vsyncadd %s291, %s296
          %s298 = smul.addr %s27, 128
          %s299 = scalar_lea.hbm %s0, %s298
          %s301 = sshll.u32 %s294, 4
          %s302 = int_to_ptr.vmem [resolvable:$true] %s301
          %304 = dma.hbm_to_vmem [thread:$0]  %s299, 128, %s302, %s291
        $region44: #{tpu_custom_call.1} parent=39 // pred_fallthru
          _
      $region40: #{tpu_custom_call.1} parent=5 // pred_fallthru
        _
      %p305 = scmp.le.s32.totalorder 1, %s20
      %p306 = scmp.lt.s32.totalorder %s20, 3
      %p307 = pnand %p305, %p306
      %p308 = pneg %p307
      // Predicated region
      $region45: #{tpu_custom_call.1} parent=5 // pred_check
        _
      $region46: #{tpu_custom_call.1} parent=5 // pred_check_branch
        %310 = sbr.rel (%p307) target = $region48
      $region47: #{tpu_custom_call.1} parent=5 // pred_region
        %s311 = ssub.s32 %s20, 1
        %s312 = sand.u32 %s45, 1
        %s313 = scalar_lea.sflag [#allocation4], %s312
        %s314 = sand.u32 %s45, 1
        %s315 = smul.addr %s314, 8
        %s316 = scalar_lea.vmem [#allocation3], %s315
        // Predicated region
        $region49: #{tpu_custom_call.1} parent=47 // pred_check
          %p317 = pneg %p58
        $region50: #{tpu_custom_call.1} parent=47 // pred_check_branch
          %319 = sbr.rel (%p317) target = $region52
        $region51: #{tpu_custom_call.1} parent=47 // pred_region
          %320 = dma.done %s313, 128
        $region52: #{tpu_custom_call.1} parent=47 // pred_fallthru
          _
        // Predicated region
        $region53: #{tpu_custom_call.1} parent=47 // pred_check
          %p321 = pneg %p79
        $region54: #{tpu_custom_call.1} parent=47 // pred_check_branch
          %323 = sbr.rel (%p321) target = $region56
        $region55: #{tpu_custom_call.1} parent=47 // pred_region
          %324 = dma.done [#allocation7], 512
        $region56: #{tpu_custom_call.1} parent=47 // pred_fallthru
          _
        // Predicated region
        $region57: #{tpu_custom_call.1} parent=47 // pred_check
          %p325 = pneg %p168
        $region58: #{tpu_custom_call.1} parent=47 // pred_check_branch
          %327 = sbr.rel (%p325) target = $region60
        $region59: #{tpu_custom_call.1} parent=47 // pred_region
          %328 = dma.done [#allocation7], 1024
        $region60: #{tpu_custom_call.1} parent=47 // pred_fallthru
          _
        %s329 = sand.u32 %s45, 1
        %s330 = scalar_lea.sflag [#allocation4], %s329
        %s331 = sand.u32 %s45, 1
        %s332 = smul.addr %s331, 8
        %s333 = scalar_lea.vmem [#allocation3], %s332
        %p334 = pneg %p58
        %p335 = pneg %p55
        %p336 = pneg %p79
        %p337 = pneg %p76
        %p338 = pneg %p100
        %p339 = pneg %p97
        %p340 = pneg %p121
        %p341 = pneg %p118
        %p342 = pneg %p142
        %p343 = pneg %p139
        %p344 = pneg %p168
        %p345 = pneg %p165
        %s346 = smul.u32 2, %s30
        %p347 = scmp.lt.s32.totalorder %s346, 1
        %s348 = scalar_select %p347, %s346, 1
        %s349 = scalar_lea.vmem %s6, %s348
        %p350 = pneg %p194
        %p351 = pneg %p191
        %p352 = pneg %p222
        %p353 = pneg %p219
        %s354 = sand.u32 %s209, 1
        %s355 = scalar_lea.sflag [#allocation5], %s354
        %s356 = sand.u32 %s209, 1
        %s357 = smul.addr %s356, 16
        %s358 = scalar_lea.vmem [#allocation9], %s357
        %s359 = smul.u32 2, %s30
        %s360 = smul.u32 2, %s30
        %p361 = scmp.lt.s32.totalorder %s360, 1
        %s362 = scalar_select %p361, %s360, 1
        %s363 = scalar_lea.vmem %s6, %s362
        %s364 = smul.u32 2, %s30
        %s365 = smul.u32 2, %s30
        %p366 = scmp.eq.s32.totalorder %s30, 0
        // Predicated region
        $region61: #{tpu_custom_call.1} parent=47 // pred_check
          %p367 = pneg %p366
        $region62: #{tpu_custom_call.1} parent=47 // pred_check_branch
          %369 = sbr.rel (%p367) target = $region64
        $region63: #{tpu_custom_call.1} parent=47 // pred_region
          %v370 = vld [vmem:[%s316] sm:$0xff]
          %v371 = vld [vmem:[#allocation6] sm:$0xff]
          %v372 = vld [vmem:[#allocation6 + $0x8] sm:$0xff]
          %v373 = vld [vmem:[#allocation6 + $0x10] sm:$0xff]
          %v374 = vld [vmem:[#allocation6 + $0x18] sm:$0xff]
          %v375 = vld [vmem:[%s2] sm:$0x1]
          %v377 = vlaneseq
          %v378 = vshrl.u32 %v377, 7
          %v379 = vsub.s32 0, %v378
          %v380 = vrot.slane %v375, %v379
          %vm382 = vcmask 261120
          %v384 = vsel %vm382, %v370, 0
          %386 = vmatprep.subr.mxu0 0.0
          %387 = vmatpush1.msra.mxu0 0.0
          %388 = vmatprep.subr.mxu0 0.0
          %389 = vmatpush1.msra.mxu0 0.0
          %390 = vmatprep.subr.mxu0 0.0
          %391 = vmatpush1.msra.mxu0 0.0
          %392 = vmatprep.subr.mxu0 0.0
          %393 = vmatpush1.msra.mxu0 0.0
          %394 = vmatprep.subr.mxu0 0.0
          %395 = vmatpush1.msra.mxu0 0.0
          %396 = vmatprep.subr.mxu0 0.0
          %397 = vmatpush1.msra.mxu0 0.0
          %398 = vmatprep.subr.mxu0 0.0
          %399 = vmatpush1.msra.mxu0 0.0
          %400 = vmatprep.subr.mxu0 0.0
          %401 = vmatpush1.msra.mxu0 0.0
          %402 = vmatprep.subr.mxu0 0.0
          %403 = vmatpush1.msra.mxu0 0.0
          %404 = vmatprep.subr.mxu0 0.0
          %405 = vmatpush1.msra.mxu0 0.0
          %406 = vmatprep.subr.mxu0 0.0
          %407 = vmatpush1.msra.mxu0 0.0
          %408 = vmatprep.subr.mxu0 0.0
          %409 = vmatpush1.msra.mxu0 0.0
          %410 = vmatprep.subr.mxu0 0.0
          %411 = vmatpush1.msra.mxu0 %v374
          %412 = vmatprep.subr.mxu0 0.0
          %413 = vmatpush1.msra.mxu0 %v373
          %414 = vmatprep.subr.mxu0 0.0
          %415 = vmatpush1.msra.mxu0 %v372
          %416 = vmatprep.subr.mxu0 0.0
          %417 = vmatpush1.msra.mxu0 %v371
          %418 = vmatprep.subr.mxu0 0.0
          %419 = vmatpush2.msra.mxu0 0.0
          %420 = vmatprep.subr.mxu0 0.0
          %421 = vmatpush2.msra.mxu0 0.0
          %422 = vmatprep.subr.mxu0 0.0
          %423 = vmatpush2.msra.mxu0 0.0
          %424 = vmatprep.subr.mxu0 0.0
          %425 = vmatpush2.msra.mxu0 0.0
          %426 = vmatprep.subr.mxu0 0.0
          %427 = vmatpush2.msra.mxu0 0.0
          %428 = vmatprep.subr.mxu0 0.0
          %429 = vmatpush2.msra.mxu0 0.0
          %430 = vmatprep.subr.mxu0 0.0
          %431 = vmatpush2.msra.mxu0 0.0
          %432 = vmatprep.subr.mxu0 0.0
          %433 = vmatpush2.msra.mxu0 0.0
          %434 = vmatprep.subr.mxu0 0.0
          %435 = vmatpush2.msra.mxu0 0.0
          %436 = vmatprep.subr.mxu0 0.0
          %437 = vmatpush2.msra.mxu0 0.0
          %438 = vmatprep.subr.mxu0 0.0
          %439 = vmatpush2.msra.mxu0 0.0
          %440 = vmatprep.subr.mxu0 0.0
          %441 = vmatpush2.msra.mxu0 0.0
          %442 = vmatprep.subr.mxu0 0.0
          %443 = vmatpush2.msra.mxu0 0.0
          %444 = vmatprep.subr.mxu0 0.0
          %445 = vmatpush2.msra.mxu0 0.0
          %446 = vmatprep.subr.mxu0 0.0
          %447 = vmatpush2.msra.mxu0 0.0
          %448 = vmatprep.subr.mxu0 0.0
          %449 = vmatpush2.msra.mxu0 0.0
          %450 = vmatprep.mubr.f32.mxu0 0.0
          %451 = vmatmul.mubr.f32.gmra.mxu0 %v384
          %v452 = vpop.f32.mrf.mxu0
          %v453 = vadd.f32 %v380, %v452
          %v454 = vpop.f32.mrf.mxu0
          %455 = vdwg.mxu0
          %v456 = vmul.f32 %v453, 0.5
          %v457 = vmul.f32 %v453, 0.70710677
          %v458 = vand.u32 2147483647, %v457
          %v459 = vmul.f32 %v458, 0.3275911
          %v460 = vadd.f32 %v459, 1.0
          %v461 = vrcp.pop %v460
          %v462 = vmul.f32 1.0, %v461
          %v463 = vmul.f32 %v462, 1.0614054
          %v464 = vadd.f32 %v463, -1.4531521
          %v465 = vmul.f32 %v464, %v462
          %v466 = vadd.f32 %v465, 1.4214138
          %v467 = vmul.f32 %v466, %v462
          %v468 = vadd.f32 %v467, -0.28449672
          %v469 = vmul.f32 %v468, %v462
          %v470 = vadd.f32 %v469, 0.2548296
          %v471 = vmul.f32 %v470, %v462
          %v472 = vsub.f32 0.0, %v458
          %v473 = vmul.f32 %v472, %v458
          %v474 = vmul.f32 %v473, 1.442695
          %v475 = vpow.pop %v474
          %v476 = vmul.f32 %v471, %v475
          %v477 = vsub.f32 1.0, %v476
          %vm478 = vcmp.ge.f32.partialorder %v457, 0.0
          %v479 = vsub.f32 0.0, %v477
          %v480 = vsel %vm478, %v477, %v479
          %v481 = vadd.f32 %v480, 1.0
          %v482 = vmul.f32 %v456, %v481
          %v483 = vsel %vm382, %v482, 0.0
          %484 = vadd.xlane.f32.xlu0 %v483
          %v485 = vpop.xlane.xlu0 %484
          %v486 = vrcp.pop 32.0
          %v487 = vmul.f32 %v485, %v486
          %v488 = vsub.f32 %v482, %v487
          %v489 = vmul.f32 %v488, %v488
          %v490 = vsel %vm382, %v489, 0.0
          %491 = vadd.xlane.f32.xlu0 %v490
          %v492 = vpop.xlane.xlu0 %491
          %v493 = vmul.f32 %v492, %v486
          %v494 = vadd.f32 %v493, 1e-12
          %v495 = vrsqrt.pop %v494
          %v496 = vmul.f32 %v488, %v495
          %v497 = vld [vmem:[%s3] sm:$0x1]
          %v499 = vlaneseq
          %v500 = vshrl.u32 %v499, 7
          %v501 = vsub.s32 0, %v500
          %v502 = vrot.slane %v497, %v501
          %v504 = vmul.f32 %v496, %v502
          %v505 = vld [vmem:[%s4] sm:$0x1]
          %v507 = vlaneseq
          %v508 = vshrl.u32 %v507, 7
          %v509 = vsub.s32 0, %v508
          %v510 = vrot.slane %v505, %v509
          %v512 = vadd.f32 %v504, %v510
          %513 = vst.msk [vmem:[#allocation2] sm:$0xff] %vm382, %v512
        $region64: #{tpu_custom_call.1} parent=47 // pred_fallthru
          _
        %v514 = vld [vmem:[#allocation2] sm:$0xff]
        %v515 = vld [vmem:[#allocation8] sm:$0xff]
        %v516 = vld [vmem:[#allocation8 + $0x8] sm:$0xff]
        %v517 = vld [vmem:[#allocation8 + $0x10] sm:$0xff]
        %v518 = vld [vmem:[#allocation8 + $0x18] sm:$0xff]
        %v519 = vld [vmem:[#allocation8 + $0x20] sm:$0xff]
        %v520 = vld [vmem:[#allocation8 + $0x28] sm:$0xff]
        %v521 = vld [vmem:[#allocation8 + $0x30] sm:$0xff]
        %v522 = vld [vmem:[#allocation8 + $0x38] sm:$0xff]
        %v523 = vld [vmem:[%s363] sm:$0x3]
        %v525 = vlaneseq
        %v526 = vshrl.u32 %v525, 7
        %v527 = vsub.s32 0, %v526
        %v528 = vrot.slane %v523, %v527
        %v529 = vlaneseq
        %v530 = vshrl.u32 %v529, 7
        %v531 = vsub.s32 1, %v530
        %v532 = vrot.slane %v523, %v531
        %vm535 = vcmask 261120
        %v537 = vsel %vm535, %v514, 0
        %539 = vmatprep.subr.mxu0 0.0
        %540 = vmatpush1.msra.mxu0 0.0
        %541 = vmatprep.subr.mxu0 0.0
        %542 = vmatpush1.msra.mxu0 0.0
        %543 = vmatprep.subr.mxu0 0.0
        %544 = vmatpush1.msra.mxu0 0.0
        %545 = vmatprep.subr.mxu0 0.0
        %546 = vmatpush1.msra.mxu0 0.0
        %547 = vmatprep.subr.mxu0 0.0
        %548 = vmatpush1.msra.mxu0 0.0
        %549 = vmatprep.subr.mxu0 0.0
        %550 = vmatpush1.msra.mxu0 0.0
        %551 = vmatprep.subr.mxu0 0.0
        %552 = vmatpush1.msra.mxu0 0.0
        %553 = vmatprep.subr.mxu0 0.0
        %554 = vmatpush1.msra.mxu0 0.0
        %555 = vmatprep.subr.mxu0 0.0
        %556 = vmatpush1.msra.mxu0 0.0
        %557 = vmatprep.subr.mxu0 0.0
        %558 = vmatpush1.msra.mxu0 0.0
        %559 = vmatprep.subr.mxu0 0.0
        %560 = vmatpush1.msra.mxu0 0.0
        %561 = vmatprep.subr.mxu0 0.0
        %562 = vmatpush1.msra.mxu0 0.0
        %563 = vmatprep.subr.mxu0 %v522
        %564 = vmatpush1.msra.mxu0 %v521
        %565 = vmatprep.subr.mxu0 %v520
        %566 = vmatpush1.msra.mxu0 %v519
        %567 = vmatprep.subr.mxu0 %v518
        %568 = vmatpush1.msra.mxu0 %v517
        %569 = vmatprep.subr.mxu0 %v516
        %570 = vmatpush1.msra.mxu0 %v515
        %571 = vmatprep.subr.mxu0 0.0
        %572 = vmatpush2.msra.mxu0 0.0
        %573 = vmatprep.subr.mxu0 0.0
        %574 = vmatpush2.msra.mxu0 0.0
        %575 = vmatprep.subr.mxu0 0.0
        %576 = vmatpush2.msra.mxu0 0.0
        %577 = vmatprep.subr.mxu0 0.0
        %578 = vmatpush2.msra.mxu0 0.0
        %579 = vmatprep.subr.mxu0 0.0
        %580 = vmatpush2.msra.mxu0 0.0
        %581 = vmatprep.subr.mxu0 0.0
        %582 = vmatpush2.msra.mxu0 0.0
        %583 = vmatprep.subr.mxu0 0.0
        %584 = vmatpush2.msra.mxu0 0.0
        %585 = vmatprep.subr.mxu0 0.0
        %586 = vmatpush2.msra.mxu0 0.0
        %587 = vmatprep.subr.mxu0 0.0
        %588 = vmatpush2.msra.mxu0 0.0
        %589 = vmatprep.subr.mxu0 0.0
        %590 = vmatpush2.msra.mxu0 0.0
        %591 = vmatprep.subr.mxu0 0.0
        %592 = vmatpush2.msra.mxu0 0.0
        %593 = vmatprep.subr.mxu0 0.0
        %594 = vmatpush2.msra.mxu0 0.0
        %595 = vmatprep.subr.mxu0 0.0
        %596 = vmatpush2.msra.mxu0 0.0
        %597 = vmatprep.subr.mxu0 0.0
        %598 = vmatpush2.msra.mxu0 0.0
        %599 = vmatprep.subr.mxu0 0.0
        %600 = vmatpush2.msra.mxu0 0.0
        %601 = vmatprep.subr.mxu0 0.0
        %602 = vmatpush2.msra.mxu0 0.0
        %603 = vmatprep.mubr.f32.mxu0 0.0
        %604 = vmatmul.mubr.f32.gmra.mxu0 %v537
        %v605 = vpop.f32.mrf.mxu0
        %v606 = vadd.f32 %v528, %v605
        %v607 = vpop.f32.mrf.mxu0
        %v608 = vadd.f32 %v532, %v607
        %609 = vdwg.mxu0
        %610 = vst [vmem:[%s358] sm:$0xff] %v606
        %611 = vst [vmem:[%s358 + $0x8] sm:$0xff] %v608
        %s612 = sand.u32 %s209, 1
        %s613 = scalar_lea.sflag [#allocation5], %s612
        %s614 = sand.u32 %s209, 1
        %s615 = smul.addr %s614, 16
        %s616 = scalar_lea.vmem [#allocation9], %s615
        // Predicated region
        $region65: #{tpu_custom_call.1} parent=47 // pred_check
          %p617 = pneg %p219
        $region66: #{tpu_custom_call.1} parent=47 // pred_check_branch
          %619 = sbr.rel (%p617) target = $region68
        $region67: #{tpu_custom_call.1} parent=47 // pred_region
          %s620 = smul.u32 2, %s30
          %s622 = ssub.s32 256, 256
          %623 = vsyncadd %s613, %s622
          %s624 = smul.addr %s29, 2
          %s625 = sadd.s32 %s620, %s624
          %s626 = smul.addr %s625, 128
          %s627 = scalar_lea.hbm %s7, %s626
          %s629 = sshll.u32 %s616, 4
          %s630 = int_to_ptr.vmem [resolvable:$true] %s629
          %632 = dma.vmem_to_hbm [thread:$0]  %s630, 256, %s627, %s613
        $region68: #{tpu_custom_call.1} parent=47 // pred_fallthru
          _
      $region48: #{tpu_custom_call.1} parent=5 // pred_fallthru
        _
      %p633 = scmp.le.s32.totalorder 2, %s20
      // Predicated region
      $region69: #{tpu_custom_call.1} parent=5 // pred_check
        %p634 = pneg %p633
      $region70: #{tpu_custom_call.1} parent=5 // pred_check_branch
        %636 = sbr.rel (%p634) target = $region72
      $region71: #{tpu_custom_call.1} parent=5 // pred_region
        %s637 = ssub.s32 %s20, 2
        // Predicated region
        $region73: #{tpu_custom_call.1} parent=71 // pred_check
          %p638 = pneg %p225
        $region74: #{tpu_custom_call.1} parent=71 // pred_check_branch
          %640 = sbr.rel (%p638) target = $region76
        $region75: #{tpu_custom_call.1} parent=71 // pred_region
          %s641 = sand.u32 %s210, 1
          %s642 = scalar_lea.sflag [#allocation5], %s641
          %s643 = sand.u32 %s210, 1
          %s644 = smul.addr %s643, 16
          %s645 = scalar_lea.vmem [#allocation9], %s644
          %646 = dma.done %s642, 256
        $region76: #{tpu_custom_call.1} parent=71 // pred_fallthru
          _
      $region72: #{tpu_custom_call.1} parent=5 // pred_fallthru
        _
    $region6: #{tpu_custom_call.1} parent=1 // loop_footer
      %s24 = sadd.s32 1, %s20
    $region7: #{tpu_custom_call.1} parent=1 // loop_footer_branch
      %19 = sbr.rel target = $region3
    $region8: #{tpu_custom_call.1} parent=1 // loop_exit
      _
    %647 = vsyncpa [#allocation4], 1
    %s648 = scalar_lea.sflag [#allocation4], 1
    %649 = vsyncpa %s648, 1
    %650 = vsyncpa [#allocation7], 1
    %651 = vsyncpa [#allocation5], 1
    %s652 = scalar_lea.sflag [#allocation5], 1
    %653 = vsyncpa %s652, 1

</llo_original>
